<compile_context>
chip_gen: v7x
topology: tpu7x:2x2x1
jax: 0.10.0
libtpu: 0.0.40
codegen_flags: <defaults>
</compile_context>

<pallas_src>
import functools

import jax
import jax.numpy as jnp
import numpy as np
from jax.experimental import pallas as pl
from jax.experimental.pallas import tpu as pltpu

TAU = 2.0       # MultiStepLIFNode tau
V_TH = 1.0      # default v_threshold
V_RESET = 0.0   # default v_reset (hard reset)
BN_EPS = 1e-5


def _make_kernel(res: bool, t_block: int, b_block: int):
    def kernel(x_ref, w1_ref, sh1_ref, w2_ref, sh2_ref, out_ref, v1_ref, v2_ref):
        # Reset the LIF membranes at the first T-block of each (batch, spatial) tile.
        @pl.when(pl.program_id(2) == 0)
        def _():
            v1_ref[...] = jnp.zeros_like(v1_ref)
            v2_ref[...] = jnp.zeros_like(v2_ref)

        # Statically unrolled (Tblk, Bblk) inner block: amortizes per-grid-step overhead while
        # keeping every Ref slice at a static offset (equivalent to fori_loop(..., unroll=True)
        # but friendlier to Mosaic addressing).
        for t in range(t_block):
            for b in range(b_block):
                x_t = x_ref[t, b]                                  # (C_in, TN) f32

                # ---- fc1_lif: charge (tau=2, v_reset=0 -> v = 0.5*(v+x)), fire, hard reset ----
                v1 = 0.5 * (v1_ref[b] + x_t)
                m1 = v1 >= V_TH
                v1_ref[b] = jnp.where(m1, V_RESET, v1)             # write back early (vreg pressure)
                s1 = m1.astype(jnp.bfloat16)                       # spikes are exact 0/1 in bf16

                # ---- fc1_conv (1x1 conv == channel matmul, BN scale folded into w1) + shift ----
                h = jnp.dot(w1_ref[...], s1, preferred_element_type=jnp.float32) + sh1_ref[...]
                if res:                                            # in_features == hidden_features
                    h = x_t + h                                    # identity == h afterwards

                # Stage the identity/residual through the output block (frees a live (C,TN) tile).
                out_ref[t, b] = h if res else x_t

                # ---- fc2_lif ----
                v2 = 0.5 * (v2_ref[b] + h)
                m2 = v2 >= V_TH
                v2_ref[b] = jnp.where(m2, V_RESET, v2)
                s2 = m2.astype(jnp.bfloat16)

                # ---- fc2_conv + shift, accumulate onto the staged identity ----
                o = jnp.dot(w2_ref[...], s2, preferred_element_type=jnp.float32)
                out_ref[t, b] += o + sh2_ref[...]

    return kernel


def _round_up(x: int, m: int) -> int:
    return (x + m - 1) // m * m


def _vmem_limit_bytes() -> int:
    """Explicit VMEM limit: ~96 MiB on v5e/v6e (128 MiB physical), ~48 MiB on v7x (64 MiB)."""
    cap = 128 * 1024 * 1024
    try:
        cap = int(pltpu.get_tpu_info().vmem_capacity_bytes)
    except Exception:
        pass
    return min(cap * 3 // 4, 112 * 1024 * 1024)


def _pick_tiling(T, B, HW, C_in, C_hid, C_out, budget):
    """Pick (TN, Tblk, Bblk, HW_pad): lane tile, timestep/batch block sizes, padded spatial size."""
    hw_pad = _round_up(HW, 128)

    def lane_tiles(n):  # multiples of 128 dividing n, descending
        k = n // 128
        return [128 * d for d in range(k, 0, -1) if k % d == 0]

    def est(tn, tb, bb):  # rough VMEM footprint in bytes
        io = 2 * tb * bb * (C_in + C_out) * tn * 4        # double-buffered in + out blocks
        mem = bb * (C_in + C_hid) * tn * 4                # LIF membrane scratch
        live = 2 * (C_in + C_hid) * tn * 4                # h / spikes / temporaries
        w = 2 * 2 * C_hid * (C_in + C_out)                # bf16 weights, double-buffered
        return io + mem + live + w + (1 << 20)            # + slack

    # 1) largest lane-dense tile (multiple of 128, <= 1024) fitting the budget
    tn = 128
    for cand in lane_tiles(hw_pad):
        if cand <= 1024 and est(cand, 1, 1) <= budget:
            tn = cand
            break

    # 2) block timesteps (amortize per-grid-step overhead, bigger DMA slabs)
    tblk = 1
    for cand in range(min(T, 8), 0, -1):
        if T % cand == 0 and est(tn, cand, 1) <= budget:
            tblk = cand
            break

    # 3) for small spatial extents also block batch, keeping >= 2 parallel grid iterations
    bblk = 1
    if hw_pad <= 512:
        n_tiles = hw_pad // tn
        max_bb = max(1, 8 // tblk)
        for cand in range(min(B, max_bb), 0, -1):
            if B % cand != 0 or est(tn, tblk, cand) > budget:
                continue
            if (B // cand) * n_tiles >= 2 or B * n_tiles < 2:
                bblk = cand
                break

    # 4) v7x megacore: if the parallel axes collapse to one iteration, split the lane tile
    if (B // bblk) * (hw_pad // tn) < 2:
        for cand in lane_tiles(hw_pad):
            if cand < tn and (B // bblk) * (hw_pad // cand) >= 2:
                tn = cand
                break

    return tn, tblk, bblk, hw_pad


def ms_mlp_conv_pallas(x, w1f, sh1, w2f, sh2, *, res: bool):
    """x: (T, B, C_in, H, W) f32.
    w1f/w2f: 1x1-conv weights with eval-mode BN scale folded in, bf16, shapes (C_hid,C_in)/(C_out,C_hid).
    sh1/sh2: folded per-channel shift (conv bias + BN), f32.
    Returns (T, B, C_out, H, W) f32."""
    T, B, C_in, H, W = x.shape
    C_hid = w1f.shape[0]
    C_out = w2f.shape[0]
    if res:
        assert C_hid == C_in, "res path requires hidden_features == in_features"
    else:
        assert C_out == C_in, "final identity add requires out_features == in_features"
    HW = H * W

    vmem_limit = _vmem_limit_bytes()
    TN, Tblk, Bblk, HW_pad = _pick_tiling(T, B, HW, C_in, C_hid, C_out,
                                          budget=int(vmem_limit * 0.9))

    x4 = x.reshape(T, B, C_in, HW)                 # free: contiguous reshape, no transpose
    if HW_pad != HW:
        # Pad the lane axis so the tile divides it: restores unmasked lane-dense stores and
        # bounds VMEM independent of the image size.  Padded lanes are sliced off below.
        x4 = jnp.pad(x4, ((0, 0), (0, 0), (0, 0), (0, HW_pad - HW)))

    sh1c = sh1.reshape(C_hid, 1).astype(jnp.float32)
    sh2c = sh2.reshape(C_out, 1).astype(jnp.float32)

    grid = (B // Bblk, HW_pad // TN, T // Tblk)    # T innermost: LIF state carried across T

    grid_spec = pltpu.PrefetchScalarGridSpec(
        num_scalar_prefetch=0,
        grid=grid,
        in_specs=[
            pl.BlockSpec((Tblk, Bblk, C_in, TN), lambda b, n, t: (t, b, 0, n)),
            pl.BlockSpec((C_hid, C_in), lambda b, n, t: (0, 0)),   # weights: constant index,
            pl.BlockSpec((C_hid, 1), lambda b, n, t: (0, 0)),      # DMA'd once by the pipeliner
            pl.BlockSpec((C_out, C_hid), lambda b, n, t: (0, 0)),
            pl.BlockSpec((C_out, 1), lambda b, n, t: (0, 0)),
        ],
        out_specs=pl.BlockSpec((Tblk, Bblk, C_out, TN), lambda b, n, t: (t, b, 0, n)),
        scratch_shapes=[
            pltpu.VMEM((Bblk, C_in, TN), jnp.float32),   # LIF1 membrane potential
            pltpu.VMEM((Bblk, C_hid, TN), jnp.float32),  # LIF2 membrane potential
        ],
    )

    y = pl.pallas_call(
        _make_kernel(res, Tblk, Bblk),
        out_shape=jax.ShapeDtypeStruct((T, B, C_out, HW_pad), jnp.float32),
        grid_spec=grid_spec,
        compiler_params=pltpu.CompilerParams(
            # batch/spatial axes parallel (v7x megacore); T carries LIF state -> sequential
            dimension_semantics=("parallel", "parallel", "arbitrary"),
            vmem_limit_bytes=vmem_limit,
        ),
    )(x4, w1f, sh1c, w2f, sh2c)

    if HW_pad != HW:
        y = y[..., :HW]
    return y.reshape(T, B, C_out, H, W)


def ms_mlp_conv_reference(x, w1f, sh1, w2f, sh2, *, res: bool):
    """Pure-JAX reference mirroring the PyTorch forward (eval-mode BN folded into w/shift)."""
    def lif(seq):
        def step(v, xt):
            v = 0.5 * (v + xt)                     # == v + (x - (v - v_reset))/tau for tau=2, reset=0
            s = (v >= V_TH).astype(jnp.float32)
            v = jnp.where(s > 0.0, V_RESET, v)
            return v, s
        _, spikes = jax.lax.scan(step, jnp.zeros_like(seq[0]), seq)
        return spikes

    def conv_bn(s, w, sh):
        y = jnp.einsum('tbchw,oc->tbohw', s, w.astype(jnp.float32),
                       precision=jax.lax.Precision.HIGHEST)
        return y + sh[None, None, :, None, None]

    identity = x
    h = conv_bn(lif(x), w1f, sh1)
    if res:
        h = identity + h
        identity = h
    o = conv_bn(lif(h), w2f, sh2)
    return o + identity


if __name__ == "__main__":
    # Small, module-consistent shapes: x is (T, B, C, H, W); H*W = 256 (lane-dense).
    T, B, C, H, W = 4, 2, 32, 16, 16
    in_features = C
    hidden_features = 32        # == in_features -> res=True branch
    out_features = 32
    res = in_features == hidden_features

    keys = jax.random.split(jax.random.PRNGKey(0), 16)
    x = 1.5 * jax.random.normal(keys[0], (T, B, C, H, W), jnp.float32)

    # Conv 1x1 weights/bias + BatchNorm params/running stats.
    w1 = jax.random.normal(keys[1], (hidden_features, in_features), jnp.float32) / np.sqrt(in_features)
    b1 = 0.1 * jax.random.normal(keys[2], (hidden_features,), jnp.float32)
    g1 = 1.0 + 0.1 * jax.random.normal(keys[3], (hidden_features,), jnp.float32)
    bt1 = 0.1 * jax.random.normal(keys[4], (hidden_features,), jnp.float32)
    rm1 = 0.1 * jax.random.normal(keys[5], (hidden_features,), jnp.float32)
    rv1 = 0.5 + jnp.abs(jax.random.normal(keys[6], (hidden_features,), jnp.float32))

    w2 = jax.random.normal(keys[7], (out_features, hidden_features), jnp.float32) / np.sqrt(hidden_features)
    b2 = 0.1 * jax.random.normal(keys[8], (out_features,), jnp.float32)
    g2 = 1.0 + 0.1 * jax.random.normal(keys[9], (out_features,), jnp.float32)
    bt2 = 0.1 * jax.random.normal(keys[10], (out_features,), jnp.float32)
    rm2 = 0.1 * jax.random.normal(keys[11], (out_features,), jnp.float32)
    rv2 = 0.5 + jnp.abs(jax.random.normal(keys[12], (out_features,), jnp.float32))

    # Fold eval-mode BN + conv bias: scale into the weights (bf16 for the MXU), shift kept separate.
    sc1 = g1 / jnp.sqrt(rv1 + BN_EPS)
    sh1 = bt1 - sc1 * rm1 + sc1 * b1
    w1f = (sc1[:, None] * w1).astype(jnp.bfloat16)
    sc2 = g2 / jnp.sqrt(rv2 + BN_EPS)
    sh2 = bt2 - sc2 * rm2 + sc2 * b2
    w2f = (sc2[:, None] * w2).astype(jnp.bfloat16)

    run = jax.jit(functools.partial(ms_mlp_conv_pallas, res=res))
    y = run(x, w1f, sh1, w2f, sh2)
    jax.block_until_ready(y)

    # Reference uses the same folded (bf16-rounded) weights with f32 accumulation,
    # so the comparison isolates the kernel math (spikes are exact 0/1 in bf16).
    y_ref = ms_mlp_conv_reference(x, w1f, sh1, w2f, sh2, res=res)
    jax.block_until_ready(y_ref)

    assert y.shape == (T, B, out_features, H, W), y.shape
    assert np.isfinite(np.asarray(y)).all()
    np.testing.assert_allclose(np.asarray(y), np.asarray(y_ref), rtol=1e-3, atol=1e-3)

    print("KERNEL_OK")
</pallas_src>

<mosaic_0001>
module attributes {stable_mosaic.version = 11 : i64} {
  func.func @kernel(%arg0: i32, %arg1: i32, %arg2: i32, %arg3: memref<4x1x32x256xf32, #tpu.memory_space<vmem>>, %arg4: memref<32x32xbf16, #tpu.memory_space<vmem>>, %arg5: memref<32x1xf32, #tpu.memory_space<vmem>>, %arg6: memref<32x32xbf16, #tpu.memory_space<vmem>>, %arg7: memref<32x1xf32, #tpu.memory_space<vmem>>, %arg8: memref<4x1x32x256xf32, #tpu.memory_space<vmem>>, %arg9: memref<1x32x256xf32, #tpu.memory_space<vmem>>, %arg10: memref<1x32x256xf32, #tpu.memory_space<vmem>>) attributes {dimension_semantics = [#tpu.dimension_semantics<parallel>, #tpu.dimension_semantics<parallel>, #tpu.dimension_semantics<arbitrary>], iteration_bounds = array<i64: 2, 1, 1>, scalar_prefetch = 0 : i64, scratch_operands = 2 : i64, tpu.core_type = #tpu.core_type<tc>, window_params = [{transform_indices = @transform_0, window_bounds = array<i64: 4, 1, 32, 256>}, {pipeline_mode = #tpu.pipeline_mode<synchronous>, transform_indices = @transform_1, window_bounds = array<i64: 32, 32>}, {pipeline_mode = #tpu.pipeline_mode<synchronous>, transform_indices = @transform_2, window_bounds = array<i64: 32, 1>}, {pipeline_mode = #tpu.pipeline_mode<synchronous>, transform_indices = @transform_3, window_bounds = array<i64: 32, 32>}, {pipeline_mode = #tpu.pipeline_mode<synchronous>, transform_indices = @transform_4, window_bounds = array<i64: 32, 1>}, {transform_indices = @transform_5, window_bounds = array<i64: 4, 1, 32, 256>}]} {
    %c0_i32 = arith.constant 0 : i32
    %0 = arith.cmpi eq, %arg2, %c0_i32 : i32
    %1 = arith.extui %0 : i1 to i32
    %c0_i32_0 = arith.constant 0 : i32
    %2 = arith.cmpi ne, %1, %c0_i32_0 : i32
    scf.if %2 {
      %cst_172 = arith.constant 0.000000e+00 : f32
      %211 = vector.broadcast %cst_172 : f32 to vector<1x32x256xf32>
      %c0_173 = arith.constant 0 : index
      %c0_174 = arith.constant 0 : index
      %c0_175 = arith.constant 0 : index
      %212 = vector.load %arg9[%c0_173, %c0_174, %c0_175] : memref<1x32x256xf32, #tpu.memory_space<vmem>>, vector<1x32x256xf32>
      tpu.vector_store %arg9[%c0_173, %c0_174, %c0_175], %211 {strides = array<i32>} : memref<1x32x256xf32, #tpu.memory_space<vmem>>, vector<1x32x256xf32>,
      %cst_176 = arith.constant 0.000000e+00 : f32
      %213 = vector.broadcast %cst_176 : f32 to vector<1x32x256xf32>
      %c0_177 = arith.constant 0 : index
      %c0_178 = arith.constant 0 : index
      %c0_179 = arith.constant 0 : index
      %214 = vector.load %arg10[%c0_177, %c0_178, %c0_179] : memref<1x32x256xf32, #tpu.memory_space<vmem>>, vector<1x32x256xf32>
      tpu.vector_store %arg10[%c0_177, %c0_178, %c0_179], %213 {strides = array<i32>} : memref<1x32x256xf32, #tpu.memory_space<vmem>>, vector<1x32x256xf32>,
    } else {
    }
    %c0 = arith.constant 0 : index
    %c0_1 = arith.constant 0 : index
    %c0_2 = arith.constant 0 : index
    %c0_3 = arith.constant 0 : index
    %3 = vector.load %arg3[%c0, %c0_1, %c0_2, %c0_3] : memref<4x1x32x256xf32, #tpu.memory_space<vmem>>, vector<1x1x32x256xf32>
    %4 = vector.shape_cast %3 : vector<1x1x32x256xf32> to vector<32x256xf32>
    %c0_4 = arith.constant 0 : index
    %c0_5 = arith.constant 0 : index
    %c0_6 = arith.constant 0 : index
    %5 = vector.load %arg9[%c0_4, %c0_5, %c0_6] : memref<1x32x256xf32, #tpu.memory_space<vmem>>, vector<1x32x256xf32>
    %6 = vector.shape_cast %5 : vector<1x32x256xf32> to vector<32x256xf32>
    %7 = arith.addf %6, %4 : vector<32x256xf32>
    %cst = arith.constant 5.000000e-01 : f32
    %8 = vector.broadcast %cst : f32 to vector<32x256xf32>
    %9 = arith.mulf %8, %7 : vector<32x256xf32>
    %cst_7 = arith.constant 1.000000e+00 : f32
    %10 = vector.broadcast %cst_7 : f32 to vector<32x256xf32>
    %11 = arith.cmpf oge, %9, %10 : vector<32x256xf32>
    %cst_8 = arith.constant 0.000000e+00 : f32
    %12 = vector.broadcast %cst_8 : f32 to vector<32x256xf32>
    %13 = arith.select %11, %12, %9 : vector<32x256xi1>, vector<32x256xf32>
    %c0_9 = arith.constant 0 : index
    %c0_10 = arith.constant 0 : index
    %c0_11 = arith.constant 0 : index
    %14 = vector.load %arg9[%c0_9, %c0_10, %c0_11] : memref<1x32x256xf32, #tpu.memory_space<vmem>>, vector<1x32x256xf32>
    %15 = vector.shape_cast %14 : vector<1x32x256xf32> to vector<32x256xf32>
    %16 = vector.shape_cast %13 : vector<32x256xf32> to vector<1x32x256xf32>
    tpu.vector_store %arg9[%c0_9, %c0_10, %c0_11], %16 {strides = array<i32>} : memref<1x32x256xf32, #tpu.memory_space<vmem>>, vector<1x32x256xf32>,
    %17 = arith.extui %11 : vector<32x256xi1> to vector<32x256xi32>
    %18 = arith.sitofp %17 : vector<32x256xi32> to vector<32x256xf32>
    %19 = arith.truncf %18 : vector<32x256xf32> to vector<32x256xbf16>
    %c0_12 = arith.constant 0 : index
    %c0_13 = arith.constant 0 : index
    %20 = vector.load %arg4[%c0_12, %c0_13] : memref<32x32xbf16, #tpu.memory_space<vmem>>, vector<32x32xbf16>
    %cst_14 = arith.constant dense<0.000000e+00> : vector<32x256xf32>
    %21 = tpu.matmul %20, %19, %cst_14 {dimension_numbers = #tpu.dot_dimension_numbers<[1], [0], [0], [1], [0, 0, 1, 1], [], []>} : vector<32x32xbf16>, vector<32x256xbf16>, vector<32x256xf32> -> vector<32x256xf32>
    %c0_15 = arith.constant 0 : index
    %c0_16 = arith.constant 0 : index
    %22 = vector.load %arg5[%c0_15, %c0_16] : memref<32x1xf32, #tpu.memory_space<vmem>>, vector<32x1xf32>
    %23 = vector.broadcast %22 : vector<32x1xf32> to vector<32x256xf32>
    %24 = arith.addf %21, %23 : vector<32x256xf32>
    %25 = arith.addf %4, %24 : vector<32x256xf32>
    %c0_17 = arith.constant 0 : index
    %c0_18 = arith.constant 0 : index
    %c0_19 = arith.constant 0 : index
    %c0_20 = arith.constant 0 : index
    %26 = vector.load %arg8[%c0_17, %c0_18, %c0_19, %c0_20] : memref<4x1x32x256xf32, #tpu.memory_space<vmem>>, vector<1x1x32x256xf32>
    %27 = vector.shape_cast %26 : vector<1x1x32x256xf32> to vector<32x256xf32>
    %28 = vector.shape_cast %25 : vector<32x256xf32> to vector<1x1x32x256xf32>
    tpu.vector_store %arg8[%c0_17, %c0_18, %c0_19, %c0_20], %28 {strides = array<i32>} : memref<4x1x32x256xf32, #tpu.memory_space<vmem>>, vector<1x1x32x256xf32>,
    %c0_21 = arith.constant 0 : index
    %c0_22 = arith.constant 0 : index
    %c0_23 = arith.constant 0 : index
    %29 = vector.load %arg10[%c0_21, %c0_22, %c0_23] : memref<1x32x256xf32, #tpu.memory_space<vmem>>, vector<1x32x256xf32>
    %30 = vector.shape_cast %29 : vector<1x32x256xf32> to vector<32x256xf32>
    %31 = arith.addf %30, %25 : vector<32x256xf32>
    %cst_24 = arith.constant 5.000000e-01 : f32
    %32 = vector.broadcast %cst_24 : f32 to vector<32x256xf32>
    %33 = arith.mulf %32, %31 : vector<32x256xf32>
    %cst_25 = arith.constant 1.000000e+00 : f32
    %34 = vector.broadcast %cst_25 : f32 to vector<32x256xf32>
    %35 = arith.cmpf oge, %33, %34 : vector<32x256xf32>
    %cst_26 = arith.constant 0.000000e+00 : f32
    %36 = vector.broadcast %cst_26 : f32 to vector<32x256xf32>
    %37 = arith.select %35, %36, %33 : vector<32x256xi1>, vector<32x256xf32>
    %c0_27 = arith.constant 0 : index
    %c0_28 = arith.constant 0 : index
    %c0_29 = arith.constant 0 : index
    %38 = vector.load %arg10[%c0_27, %c0_28, %c0_29] : memref<1x32x256xf32, #tpu.memory_space<vmem>>, vector<1x32x256xf32>
    %39 = vector.shape_cast %38 : vector<1x32x256xf32> to vector<32x256xf32>
    %40 = vector.shape_cast %37 : vector<32x256xf32> to vector<1x32x256xf32>
    tpu.vector_store %arg10[%c0_27, %c0_28, %c0_29], %40 {strides = array<i32>} : memref<1x32x256xf32, #tpu.memory_space<vmem>>, vector<1x32x256xf32>,
    %41 = arith.extui %35 : vector<32x256xi1> to vector<32x256xi32>
    %42 = arith.sitofp %41 : vector<32x256xi32> to vector<32x256xf32>
    %43 = arith.truncf %42 : vector<32x256xf32> to vector<32x256xbf16>
    %c0_30 = arith.constant 0 : index
    %c0_31 = arith.constant 0 : index
    %44 = vector.load %arg6[%c0_30, %c0_31] : memref<32x32xbf16, #tpu.memory_space<vmem>>, vector<32x32xbf16>
    %cst_32 = arith.constant dense<0.000000e+00> : vector<32x256xf32>
    %45 = tpu.matmul %44, %43, %cst_32 {dimension_numbers = #tpu.dot_dimension_numbers<[1], [0], [0], [1], [0, 0, 1, 1], [], []>} : vector<32x32xbf16>, vector<32x256xbf16>, vector<32x256xf32> -> vector<32x256xf32>
    %c0_33 = arith.constant 0 : index
    %c0_34 = arith.constant 0 : index
    %c0_35 = arith.constant 0 : index
    %c0_36 = arith.constant 0 : index
    %46 = vector.load %arg8[%c0_33, %c0_34, %c0_35, %c0_36] : memref<4x1x32x256xf32, #tpu.memory_space<vmem>>, vector<1x1x32x256xf32>
    %47 = vector.shape_cast %46 : vector<1x1x32x256xf32> to vector<32x256xf32>
    %c0_37 = arith.constant 0 : index
    %c0_38 = arith.constant 0 : index
    %48 = vector.load %arg7[%c0_37, %c0_38] : memref<32x1xf32, #tpu.memory_space<vmem>>, vector<32x1xf32>
    %49 = vector.broadcast %48 : vector<32x1xf32> to vector<32x256xf32>
    %50 = arith.addf %45, %49 : vector<32x256xf32>
    %51 = arith.addf %47, %50 : vector<32x256xf32>
    %c0_39 = arith.constant 0 : index
    %c0_40 = arith.constant 0 : index
    %c0_41 = arith.constant 0 : index
    %c0_42 = arith.constant 0 : index
    %52 = vector.load %arg8[%c0_39, %c0_40, %c0_41, %c0_42] : memref<4x1x32x256xf32, #tpu.memory_space<vmem>>, vector<1x1x32x256xf32>
    %53 = vector.shape_cast %52 : vector<1x1x32x256xf32> to vector<32x256xf32>
    %54 = vector.shape_cast %51 : vector<32x256xf32> to vector<1x1x32x256xf32>
    tpu.vector_store %arg8[%c0_39, %c0_40, %c0_41, %c0_42], %54 {strides = array<i32>} : memref<4x1x32x256xf32, #tpu.memory_space<vmem>>, vector<1x1x32x256xf32>,
    %c1 = arith.constant 1 : index
    %c0_43 = arith.constant 0 : index
    %c0_44 = arith.constant 0 : index
    %c0_45 = arith.constant 0 : index
    %55 = vector.load %arg3[%c1, %c0_43, %c0_44, %c0_45] : memref<4x1x32x256xf32, #tpu.memory_space<vmem>>, vector<1x1x32x256xf32>
    %56 = vector.shape_cast %55 : vector<1x1x32x256xf32> to vector<32x256xf32>
    %c0_46 = arith.constant 0 : index
    %c0_47 = arith.constant 0 : index
    %c0_48 = arith.constant 0 : index
    %57 = vector.load %arg9[%c0_46, %c0_47, %c0_48] : memref<1x32x256xf32, #tpu.memory_space<vmem>>, vector<1x32x256xf32>
    %58 = vector.shape_cast %57 : vector<1x32x256xf32> to vector<32x256xf32>
    %59 = arith.addf %58, %56 : vector<32x256xf32>
    %cst_49 = arith.constant 5.000000e-01 : f32
    %60 = vector.broadcast %cst_49 : f32 to vector<32x256xf32>
    %61 = arith.mulf %60, %59 : vector<32x256xf32>
    %cst_50 = arith.constant 1.000000e+00 : f32
    %62 = vector.broadcast %cst_50 : f32 to vector<32x256xf32>
    %63 = arith.cmpf oge, %61, %62 : vector<32x256xf32>
    %cst_51 = arith.constant 0.000000e+00 : f32
    %64 = vector.broadcast %cst_51 : f32 to vector<32x256xf32>
    %65 = arith.select %63, %64, %61 : vector<32x256xi1>, vector<32x256xf32>
    %c0_52 = arith.constant 0 : index
    %c0_53 = arith.constant 0 : index
    %c0_54 = arith.constant 0 : index
    %66 = vector.load %arg9[%c0_52, %c0_53, %c0_54] : memref<1x32x256xf32, #tpu.memory_space<vmem>>, vector<1x32x256xf32>
    %67 = vector.shape_cast %66 : vector<1x32x256xf32> to vector<32x256xf32>
    %68 = vector.shape_cast %65 : vector<32x256xf32> to vector<1x32x256xf32>
    tpu.vector_store %arg9[%c0_52, %c0_53, %c0_54], %68 {strides = array<i32>} : memref<1x32x256xf32, #tpu.memory_space<vmem>>, vector<1x32x256xf32>,
    %69 = arith.extui %63 : vector<32x256xi1> to vector<32x256xi32>
    %70 = arith.sitofp %69 : vector<32x256xi32> to vector<32x256xf32>
    %71 = arith.truncf %70 : vector<32x256xf32> to vector<32x256xbf16>
    %c0_55 = arith.constant 0 : index
    %c0_56 = arith.constant 0 : index
    %72 = vector.load %arg4[%c0_55, %c0_56] : memref<32x32xbf16, #tpu.memory_space<vmem>>, vector<32x32xbf16>
    %cst_57 = arith.constant dense<0.000000e+00> : vector<32x256xf32>
    %73 = tpu.matmul %72, %71, %cst_57 {dimension_numbers = #tpu.dot_dimension_numbers<[1], [0], [0], [1], [0, 0, 1, 1], [], []>} : vector<32x32xbf16>, vector<32x256xbf16>, vector<32x256xf32> -> vector<32x256xf32>
    %c0_58 = arith.constant 0 : index
    %c0_59 = arith.constant 0 : index
    %74 = vector.load %arg5[%c0_58, %c0_59] : memref<32x1xf32, #tpu.memory_space<vmem>>, vector<32x1xf32>
    %75 = vector.broadcast %74 : vector<32x1xf32> to vector<32x256xf32>
    %76 = arith.addf %73, %75 : vector<32x256xf32>
    %77 = arith.addf %56, %76 : vector<32x256xf32>
    %c1_60 = arith.constant 1 : index
    %c0_61 = arith.constant 0 : index
    %c0_62 = arith.constant 0 : index
    %c0_63 = arith.constant 0 : index
    %78 = vector.load %arg8[%c1_60, %c0_61, %c0_62, %c0_63] : memref<4x1x32x256xf32, #tpu.memory_space<vmem>>, vector<1x1x32x256xf32>
    %79 = vector.shape_cast %78 : vector<1x1x32x256xf32> to vector<32x256xf32>
    %80 = vector.shape_cast %77 : vector<32x256xf32> to vector<1x1x32x256xf32>
    tpu.vector_store %arg8[%c1_60, %c0_61, %c0_62, %c0_63], %80 {strides = array<i32>} : memref<4x1x32x256xf32, #tpu.memory_space<vmem>>, vector<1x1x32x256xf32>,
    %c0_64 = arith.constant 0 : index
    %c0_65 = arith.constant 0 : index
    %c0_66 = arith.constant 0 : index
    %81 = vector.load %arg10[%c0_64, %c0_65, %c0_66] : memref<1x32x256xf32, #tpu.memory_space<vmem>>, vector<1x32x256xf32>
    %82 = vector.shape_cast %81 : vector<1x32x256xf32> to vector<32x256xf32>
    %83 = arith.addf %82, %77 : vector<32x256xf32>
    %cst_67 = arith.constant 5.000000e-01 : f32
    %84 = vector.broadcast %cst_67 : f32 to vector<32x256xf32>
    %85 = arith.mulf %84, %83 : vector<32x256xf32>
    %cst_68 = arith.constant 1.000000e+00 : f32
    %86 = vector.broadcast %cst_68 : f32 to vector<32x256xf32>
    %87 = arith.cmpf oge, %85, %86 : vector<32x256xf32>
    %cst_69 = arith.constant 0.000000e+00 : f32
    %88 = vector.broadcast %cst_69 : f32 to vector<32x256xf32>
    %89 = arith.select %87, %88, %85 : vector<32x256xi1>, vector<32x256xf32>
    %c0_70 = arith.constant 0 : index
    %c0_71 = arith.constant 0 : index
    %c0_72 = arith.constant 0 : index
    %90 = vector.load %arg10[%c0_70, %c0_71, %c0_72] : memref<1x32x256xf32, #tpu.memory_space<vmem>>, vector<1x32x256xf32>
    %91 = vector.shape_cast %90 : vector<1x32x256xf32> to vector<32x256xf32>
    %92 = vector.shape_cast %89 : vector<32x256xf32> to vector<1x32x256xf32>
    tpu.vector_store %arg10[%c0_70, %c0_71, %c0_72], %92 {strides = array<i32>} : memref<1x32x256xf32, #tpu.memory_space<vmem>>, vector<1x32x256xf32>,
    %93 = arith.extui %87 : vector<32x256xi1> to vector<32x256xi32>
    %94 = arith.sitofp %93 : vector<32x256xi32> to vector<32x256xf32>
    %95 = arith.truncf %94 : vector<32x256xf32> to vector<32x256xbf16>
    %c0_73 = arith.constant 0 : index
    %c0_74 = arith.constant 0 : index
    %96 = vector.load %arg6[%c0_73, %c0_74] : memref<32x32xbf16, #tpu.memory_space<vmem>>, vector<32x32xbf16>
    %cst_75 = arith.constant dense<0.000000e+00> : vector<32x256xf32>
    %97 = tpu.matmul %96, %95, %cst_75 {dimension_numbers = #tpu.dot_dimension_numbers<[1], [0], [0], [1], [0, 0, 1, 1], [], []>} : vector<32x32xbf16>, vector<32x256xbf16>, vector<32x256xf32> -> vector<32x256xf32>
    %c1_76 = arith.constant 1 : index
    %c0_77 = arith.constant 0 : index
    %c0_78 = arith.constant 0 : index
    %c0_79 = arith.constant 0 : index
    %98 = vector.load %arg8[%c1_76, %c0_77, %c0_78, %c0_79] : memref<4x1x32x256xf32, #tpu.memory_space<vmem>>, vector<1x1x32x256xf32>
    %99 = vector.shape_cast %98 : vector<1x1x32x256xf32> to vector<32x256xf32>
    %c0_80 = arith.constant 0 : index
    %c0_81 = arith.constant 0 : index
    %100 = vector.load %arg7[%c0_80, %c0_81] : memref<32x1xf32, #tpu.memory_space<vmem>>, vector<32x1xf32>
    %101 = vector.broadcast %100 : vector<32x1xf32> to vector<32x256xf32>
    %102 = arith.addf %97, %101 : vector<32x256xf32>
    %103 = arith.addf %99, %102 : vector<32x256xf32>
    %c1_82 = arith.constant 1 : index
    %c0_83 = arith.constant 0 : index
    %c0_84 = arith.constant 0 : index
    %c0_85 = arith.constant 0 : index
    %104 = vector.load %arg8[%c1_82, %c0_83, %c0_84, %c0_85] : memref<4x1x32x256xf32, #tpu.memory_space<vmem>>, vector<1x1x32x256xf32>
    %105 = vector.shape_cast %104 : vector<1x1x32x256xf32> to vector<32x256xf32>
    %106 = vector.shape_cast %103 : vector<32x256xf32> to vector<1x1x32x256xf32>
    tpu.vector_store %arg8[%c1_82, %c0_83, %c0_84, %c0_85], %106 {strides = array<i32>} : memref<4x1x32x256xf32, #tpu.memory_space<vmem>>, vector<1x1x32x256xf32>,
    %c2 = arith.constant 2 : index
    %c0_86 = arith.constant 0 : index
    %c0_87 = arith.constant 0 : index
    %c0_88 = arith.constant 0 : index
    %107 = vector.load %arg3[%c2, %c0_86, %c0_87, %c0_88] : memref<4x1x32x256xf32, #tpu.memory_space<vmem>>, vector<1x1x32x256xf32>
    %108 = vector.shape_cast %107 : vector<1x1x32x256xf32> to vector<32x256xf32>
    %c0_89 = arith.constant 0 : index
    %c0_90 = arith.constant 0 : index
    %c0_91 = arith.constant 0 : index
    %109 = vector.load %arg9[%c0_89, %c0_90, %c0_91] : memref<1x32x256xf32, #tpu.memory_space<vmem>>, vector<1x32x256xf32>
    %110 = vector.shape_cast %109 : vector<1x32x256xf32> to vector<32x256xf32>
    %111 = arith.addf %110, %108 : vector<32x256xf32>
    %cst_92 = arith.constant 5.000000e-01 : f32
    %112 = vector.broadcast %cst_92 : f32 to vector<32x256xf32>
    %113 = arith.mulf %112, %111 : vector<32x256xf32>
    %cst_93 = arith.constant 1.000000e+00 : f32
    %114 = vector.broadcast %cst_93 : f32 to vector<32x256xf32>
    %115 = arith.cmpf oge, %113, %114 : vector<32x256xf32>
    %cst_94 = arith.constant 0.000000e+00 : f32
    %116 = vector.broadcast %cst_94 : f32 to vector<32x256xf32>
    %117 = arith.select %115, %116, %113 : vector<32x256xi1>, vector<32x256xf32>
    %c0_95 = arith.constant 0 : index
    %c0_96 = arith.constant 0 : index
    %c0_97 = arith.constant 0 : index
    %118 = vector.load %arg9[%c0_95, %c0_96, %c0_97] : memref<1x32x256xf32, #tpu.memory_space<vmem>>, vector<1x32x256xf32>
    %119 = vector.shape_cast %118 : vector<1x32x256xf32> to vector<32x256xf32>
    %120 = vector.shape_cast %117 : vector<32x256xf32> to vector<1x32x256xf32>
    tpu.vector_store %arg9[%c0_95, %c0_96, %c0_97], %120 {strides = array<i32>} : memref<1x32x256xf32, #tpu.memory_space<vmem>>, vector<1x32x256xf32>,
    %121 = arith.extui %115 : vector<32x256xi1> to vector<32x256xi32>
    %122 = arith.sitofp %121 : vector<32x256xi32> to vector<32x256xf32>
    %123 = arith.truncf %122 : vector<32x256xf32> to vector<32x256xbf16>
    %c0_98 = arith.constant 0 : index
    %c0_99 = arith.constant 0 : index
    %124 = vector.load %arg4[%c0_98, %c0_99] : memref<32x32xbf16, #tpu.memory_space<vmem>>, vector<32x32xbf16>
    %cst_100 = arith.constant dense<0.000000e+00> : vector<32x256xf32>
    %125 = tpu.matmul %124, %123, %cst_100 {dimension_numbers = #tpu.dot_dimension_numbers<[1], [0], [0], [1], [0, 0, 1, 1], [], []>} : vector<32x32xbf16>, vector<32x256xbf16>, vector<32x256xf32> -> vector<32x256xf32>
    %c0_101 = arith.constant 0 : index
    %c0_102 = arith.constant 0 : index
    %126 = vector.load %arg5[%c0_101, %c0_102] : memref<32x1xf32, #tpu.memory_space<vmem>>, vector<32x1xf32>
    %127 = vector.broadcast %126 : vector<32x1xf32> to vector<32x256xf32>
    %128 = arith.addf %125, %127 : vector<32x256xf32>
    %129 = arith.addf %108, %128 : vector<32x256xf32>
    %c2_103 = arith.constant 2 : index
    %c0_104 = arith.constant 0 : index
    %c0_105 = arith.constant 0 : index
    %c0_106 = arith.constant 0 : index
    %130 = vector.load %arg8[%c2_103, %c0_104, %c0_105, %c0_106] : memref<4x1x32x256xf32, #tpu.memory_space<vmem>>, vector<1x1x32x256xf32>
    %131 = vector.shape_cast %130 : vector<1x1x32x256xf32> to vector<32x256xf32>
    %132 = vector.shape_cast %129 : vector<32x256xf32> to vector<1x1x32x256xf32>
    tpu.vector_store %arg8[%c2_103, %c0_104, %c0_105, %c0_106], %132 {strides = array<i32>} : memref<4x1x32x256xf32, #tpu.memory_space<vmem>>, vector<1x1x32x256xf32>,
    %c0_107 = arith.constant 0 : index
    %c0_108 = arith.constant 0 : index
    %c0_109 = arith.constant 0 : index
    %133 = vector.load %arg10[%c0_107, %c0_108, %c0_109] : memref<1x32x256xf32, #tpu.memory_space<vmem>>, vector<1x32x256xf32>
    %134 = vector.shape_cast %133 : vector<1x32x256xf32> to vector<32x256xf32>
    %135 = arith.addf %134, %129 : vector<32x256xf32>
    %cst_110 = arith.constant 5.000000e-01 : f32
    %136 = vector.broadcast %cst_110 : f32 to vector<32x256xf32>
    %137 = arith.mulf %136, %135 : vector<32x256xf32>
    %cst_111 = arith.constant 1.000000e+00 : f32
    %138 = vector.broadcast %cst_111 : f32 to vector<32x256xf32>
    %139 = arith.cmpf oge, %137, %138 : vector<32x256xf32>
    %cst_112 = arith.constant 0.000000e+00 : f32
    %140 = vector.broadcast %cst_112 : f32 to vector<32x256xf32>
    %141 = arith.select %139, %140, %137 : vector<32x256xi1>, vector<32x256xf32>
    %c0_113 = arith.constant 0 : index
    %c0_114 = arith.constant 0 : index
    %c0_115 = arith.constant 0 : index
    %142 = vector.load %arg10[%c0_113, %c0_114, %c0_115] : memref<1x32x256xf32, #tpu.memory_space<vmem>>, vector<1x32x256xf32>
    %143 = vector.shape_cast %142 : vector<1x32x256xf32> to vector<32x256xf32>
    %144 = vector.shape_cast %141 : vector<32x256xf32> to vector<1x32x256xf32>
    tpu.vector_store %arg10[%c0_113, %c0_114, %c0_115], %144 {strides = array<i32>} : memref<1x32x256xf32, #tpu.memory_space<vmem>>, vector<1x32x256xf32>,
    %145 = arith.extui %139 : vector<32x256xi1> to vector<32x256xi32>
    %146 = arith.sitofp %145 : vector<32x256xi32> to vector<32x256xf32>
    %147 = arith.truncf %146 : vector<32x256xf32> to vector<32x256xbf16>
    %c0_116 = arith.constant 0 : index
    %c0_117 = arith.constant 0 : index
    %148 = vector.load %arg6[%c0_116, %c0_117] : memref<32x32xbf16, #tpu.memory_space<vmem>>, vector<32x32xbf16>
    %cst_118 = arith.constant dense<0.000000e+00> : vector<32x256xf32>
    %149 = tpu.matmul %148, %147, %cst_118 {dimension_numbers = #tpu.dot_dimension_numbers<[1], [0], [0], [1], [0, 0, 1, 1], [], []>} : vector<32x32xbf16>, vector<32x256xbf16>, vector<32x256xf32> -> vector<32x256xf32>
    %c2_119 = arith.constant 2 : index
    %c0_120 = arith.constant 0 : index
    %c0_121 = arith.constant 0 : index
    %c0_122 = arith.constant 0 : index
    %150 = vector.load %arg8[%c2_119, %c0_120, %c0_121, %c0_122] : memref<4x1x32x256xf32, #tpu.memory_space<vmem>>, vector<1x1x32x256xf32>
    %151 = vector.shape_cast %150 : vector<1x1x32x256xf32> to vector<32x256xf32>
    %c0_123 = arith.constant 0 : index
    %c0_124 = arith.constant 0 : index
    %152 = vector.load %arg7[%c0_123, %c0_124] : memref<32x1xf32, #tpu.memory_space<vmem>>, vector<32x1xf32>
    %153 = vector.broadcast %152 : vector<32x1xf32> to vector<32x256xf32>
    %154 = arith.addf %149, %153 : vector<32x256xf32>
    %155 = arith.addf %151, %154 : vector<32x256xf32>
    %c2_125 = arith.constant 2 : index
    %c0_126 = arith.constant 0 : index
    %c0_127 = arith.constant 0 : index
    %c0_128 = arith.constant 0 : index
    %156 = vector.load %arg8[%c2_125, %c0_126, %c0_127, %c0_128] : memref<4x1x32x256xf32, #tpu.memory_space<vmem>>, vector<1x1x32x256xf32>
    %157 = vector.shape_cast %156 : vector<1x1x32x256xf32> to vector<32x256xf32>
    %158 = vector.shape_cast %155 : vector<32x256xf32> to vector<1x1x32x256xf32>
    tpu.vector_store %arg8[%c2_125, %c0_126, %c0_127, %c0_128], %158 {strides = array<i32>} : memref<4x1x32x256xf32, #tpu.memory_space<vmem>>, vector<1x1x32x256xf32>,
    %c3 = arith.constant 3 : index
    %c0_129 = arith.constant 0 : index
    %c0_130 = arith.constant 0 : index
    %c0_131 = arith.constant 0 : index
    %159 = vector.load %arg3[%c3, %c0_129, %c0_130, %c0_131] : memref<4x1x32x256xf32, #tpu.memory_space<vmem>>, vector<1x1x32x256xf32>
    %160 = vector.shape_cast %159 : vector<1x1x32x256xf32> to vector<32x256xf32>
    %c0_132 = arith.constant 0 : index
    %c0_133 = arith.constant 0 : index
    %c0_134 = arith.constant 0 : index
    %161 = vector.load %arg9[%c0_132, %c0_133, %c0_134] : memref<1x32x256xf32, #tpu.memory_space<vmem>>, vector<1x32x256xf32>
    %162 = vector.shape_cast %161 : vector<1x32x256xf32> to vector<32x256xf32>
    %163 = arith.addf %162, %160 : vector<32x256xf32>
    %cst_135 = arith.constant 5.000000e-01 : f32
    %164 = vector.broadcast %cst_135 : f32 to vector<32x256xf32>
    %165 = arith.mulf %164, %163 : vector<32x256xf32>
    %cst_136 = arith.constant 1.000000e+00 : f32
    %166 = vector.broadcast %cst_136 : f32 to vector<32x256xf32>
    %167 = arith.cmpf oge, %165, %166 : vector<32x256xf32>
    %cst_137 = arith.constant 0.000000e+00 : f32
    %168 = vector.broadcast %cst_137 : f32 to vector<32x256xf32>
    %169 = arith.select %167, %168, %165 : vector<32x256xi1>, vector<32x256xf32>
    %c0_138 = arith.constant 0 : index
    %c0_139 = arith.constant 0 : index
    %c0_140 = arith.constant 0 : index
    %170 = vector.load %arg9[%c0_138, %c0_139, %c0_140] : memref<1x32x256xf32, #tpu.memory_space<vmem>>, vector<1x32x256xf32>
    %171 = vector.shape_cast %170 : vector<1x32x256xf32> to vector<32x256xf32>
    %172 = vector.shape_cast %169 : vector<32x256xf32> to vector<1x32x256xf32>
    tpu.vector_store %arg9[%c0_138, %c0_139, %c0_140], %172 {strides = array<i32>} : memref<1x32x256xf32, #tpu.memory_space<vmem>>, vector<1x32x256xf32>,
    %173 = arith.extui %167 : vector<32x256xi1> to vector<32x256xi32>
    %174 = arith.sitofp %173 : vector<32x256xi32> to vector<32x256xf32>
    %175 = arith.truncf %174 : vector<32x256xf32> to vector<32x256xbf16>
    %c0_141 = arith.constant 0 : index
    %c0_142 = arith.constant 0 : index
    %176 = vector.load %arg4[%c0_141, %c0_142] : memref<32x32xbf16, #tpu.memory_space<vmem>>, vector<32x32xbf16>
    %cst_143 = arith.constant dense<0.000000e+00> : vector<32x256xf32>
    %177 = tpu.matmul %176, %175, %cst_143 {dimension_numbers = #tpu.dot_dimension_numbers<[1], [0], [0], [1], [0, 0, 1, 1], [], []>} : vector<32x32xbf16>, vector<32x256xbf16>, vector<32x256xf32> -> vector<32x256xf32>
    %c0_144 = arith.constant 0 : index
    %c0_145 = arith.constant 0 : index
    %178 = vector.load %arg5[%c0_144, %c0_145] : memref<32x1xf32, #tpu.memory_space<vmem>>, vector<32x1xf32>
    %179 = vector.broadcast %178 : vector<32x1xf32> to vector<32x256xf32>
    %180 = arith.addf %177, %179 : vector<32x256xf32>
    %181 = arith.addf %160, %180 : vector<32x256xf32>
    %c3_146 = arith.constant 3 : index
    %c0_147 = arith.constant 0 : index
    %c0_148 = arith.constant 0 : index
    %c0_149 = arith.constant 0 : index
    %182 = vector.load %arg8[%c3_146, %c0_147, %c0_148, %c0_149] : memref<4x1x32x256xf32, #tpu.memory_space<vmem>>, vector<1x1x32x256xf32>
    %183 = vector.shape_cast %182 : vector<1x1x32x256xf32> to vector<32x256xf32>
    %184 = vector.shape_cast %181 : vector<32x256xf32> to vector<1x1x32x256xf32>
    tpu.vector_store %arg8[%c3_146, %c0_147, %c0_148, %c0_149], %184 {strides = array<i32>} : memref<4x1x32x256xf32, #tpu.memory_space<vmem>>, vector<1x1x32x256xf32>,
    %c0_150 = arith.constant 0 : index
    %c0_151 = arith.constant 0 : index
    %c0_152 = arith.constant 0 : index
    %185 = vector.load %arg10[%c0_150, %c0_151, %c0_152] : memref<1x32x256xf32, #tpu.memory_space<vmem>>, vector<1x32x256xf32>
    %186 = vector.shape_cast %185 : vector<1x32x256xf32> to vector<32x256xf32>
    %187 = arith.addf %186, %181 : vector<32x256xf32>
    %cst_153 = arith.constant 5.000000e-01 : f32
    %188 = vector.broadcast %cst_153 : f32 to vector<32x256xf32>
    %189 = arith.mulf %188, %187 : vector<32x256xf32>
    %cst_154 = arith.constant 1.000000e+00 : f32
    %190 = vector.broadcast %cst_154 : f32 to vector<32x256xf32>
    %191 = arith.cmpf oge, %189, %190 : vector<32x256xf32>
    %cst_155 = arith.constant 0.000000e+00 : f32
    %192 = vector.broadcast %cst_155 : f32 to vector<32x256xf32>
    %193 = arith.select %191, %192, %189 : vector<32x256xi1>, vector<32x256xf32>
    %c0_156 = arith.constant 0 : index
    %c0_157 = arith.constant 0 : index
    %c0_158 = arith.constant 0 : index
    %194 = vector.load %arg10[%c0_156, %c0_157, %c0_158] : memref<1x32x256xf32, #tpu.memory_space<vmem>>, vector<1x32x256xf32>
    %195 = vector.shape_cast %194 : vector<1x32x256xf32> to vector<32x256xf32>
    %196 = vector.shape_cast %193 : vector<32x256xf32> to vector<1x32x256xf32>
    tpu.vector_store %arg10[%c0_156, %c0_157, %c0_158], %196 {strides = array<i32>} : memref<1x32x256xf32, #tpu.memory_space<vmem>>, vector<1x32x256xf32>,
    %197 = arith.extui %191 : vector<32x256xi1> to vector<32x256xi32>
    %198 = arith.sitofp %197 : vector<32x256xi32> to vector<32x256xf32>
    %199 = arith.truncf %198 : vector<32x256xf32> to vector<32x256xbf16>
    %c0_159 = arith.constant 0 : index
    %c0_160 = arith.constant 0 : index
    %200 = vector.load %arg6[%c0_159, %c0_160] : memref<32x32xbf16, #tpu.memory_space<vmem>>, vector<32x32xbf16>
    %cst_161 = arith.constant dense<0.000000e+00> : vector<32x256xf32>
    %201 = tpu.matmul %200, %199, %cst_161 {dimension_numbers = #tpu.dot_dimension_numbers<[1], [0], [0], [1], [0, 0, 1, 1], [], []>} : vector<32x32xbf16>, vector<32x256xbf16>, vector<32x256xf32> -> vector<32x256xf32>
    %c3_162 = arith.constant 3 : index
    %c0_163 = arith.constant 0 : index
    %c0_164 = arith.constant 0 : index
    %c0_165 = arith.constant 0 : index
    %202 = vector.load %arg8[%c3_162, %c0_163, %c0_164, %c0_165] : memref<4x1x32x256xf32, #tpu.memory_space<vmem>>, vector<1x1x32x256xf32>
    %203 = vector.shape_cast %202 : vector<1x1x32x256xf32> to vector<32x256xf32>
    %c0_166 = arith.constant 0 : index
    %c0_167 = arith.constant 0 : index
    %204 = vector.load %arg7[%c0_166, %c0_167] : memref<32x1xf32, #tpu.memory_space<vmem>>, vector<32x1xf32>
    %205 = vector.broadcast %204 : vector<32x1xf32> to vector<32x256xf32>
    %206 = arith.addf %201, %205 : vector<32x256xf32>
    %207 = arith.addf %203, %206 : vector<32x256xf32>
    %c3_168 = arith.constant 3 : index
    %c0_169 = arith.constant 0 : index
    %c0_170 = arith.constant 0 : index
    %c0_171 = arith.constant 0 : index
    %208 = vector.load %arg8[%c3_168, %c0_169, %c0_170, %c0_171] : memref<4x1x32x256xf32, #tpu.memory_space<vmem>>, vector<1x1x32x256xf32>
    %209 = vector.shape_cast %208 : vector<1x1x32x256xf32> to vector<32x256xf32>
    %210 = vector.shape_cast %207 : vector<32x256xf32> to vector<1x1x32x256xf32>
    tpu.vector_store %arg8[%c3_168, %c0_169, %c0_170, %c0_171], %210 {strides = array<i32>} : memref<4x1x32x256xf32, #tpu.memory_space<vmem>>, vector<1x1x32x256xf32>,
    return
  }
  func.func @transform_0(%arg0: i32, %arg1: i32, %arg2: i32) -> (i32, i32, i32, i32) {
    %c0_i32 = arith.constant 0 : i32
    %c0_i32_0 = arith.constant 0 : i32
    return %arg2, %arg0, %c0_i32, %arg1 : i32, i32, i32, i32
  }
  func.func @transform_1(%arg0: i32, %arg1: i32, %arg2: i32) -> (i32, i32) {
    %c0_i32 = arith.constant 0 : i32
    %c0_i32_0 = arith.constant 0 : i32
    %c0_i32_1 = arith.constant 0 : i32
    return %c0_i32, %c0_i32_0 : i32, i32
  }
  func.func @transform_2(%arg0: i32, %arg1: i32, %arg2: i32) -> (i32, i32) {
    %c0_i32 = arith.constant 0 : i32
    %c0_i32_0 = arith.constant 0 : i32
    %c0_i32_1 = arith.constant 0 : i32
    return %c0_i32, %c0_i32_0 : i32, i32
  }
  func.func @transform_3(%arg0: i32, %arg1: i32, %arg2: i32) -> (i32, i32) {
    %c0_i32 = arith.constant 0 : i32
    %c0_i32_0 = arith.constant 0 : i32
    %c0_i32_1 = arith.constant 0 : i32
    return %c0_i32, %c0_i32_0 : i32, i32
  }
  func.func @transform_4(%arg0: i32, %arg1: i32, %arg2: i32) -> (i32, i32) {
    %c0_i32 = arith.constant 0 : i32
    %c0_i32_0 = arith.constant 0 : i32
    %c0_i32_1 = arith.constant 0 : i32
    return %c0_i32, %c0_i32_0 : i32, i32
  }
  func.func @transform_5(%arg0: i32, %arg1: i32, %arg2: i32) -> (i32, i32, i32, i32) {
    %c0_i32 = arith.constant 0 : i32
    %c0_i32_0 = arith.constant 0 : i32
    return %arg2, %arg0, %c0_i32, %arg1 : i32, i32, i32, i32
  }
}

</mosaic_0001>

<llo_original>
// kernel: ms_mlp_conv_pallas.1
$region0: #{ms_mlp_conv_pallas.1}
  #allocation0 [shape = 'u32[]', space=smem, size = 0x4, offset = 0x4, fixed_abs, tag = 'smem constant byte address 0x4 - core index']
  #allocation1 [shape = 'u32[144,128]{1,0:T(1,128)}', space=vmem, size = 0x12000, scoped, tag = 'internal scratch']
  #allocation2 [shape = 'f32[1,32,256]{2,1,0:T(8,128)}', space=vmem, size = 0x8000, scoped, tag = 'scratch operand']
  #allocation3 [shape = 'f32[1,32,256]{2,1,0:T(8,128)}', space=vmem, size = 0x8000, scoped, tag = 'scratch operand']
  #allocation14 [shape = 's32[]', space=sflag, size = 0x4, offset = 0, fixed_abs, tag = 'sflag constant byte address 0x0 - dummy sync flag']
  #allocation16 [shape = 's32[]', space=sflag, size = 0x4, offset = 0, fixed_abs, tag = 'sflag constant byte address 0x0 - dummy sync flag']
  %s0 = inlined_call_operand.hbm [shape: f32[4,2,32,256], index: 0, kind: input, shape index: {}]
  %s1 = inlined_call_operand.hbm [shape: bf16[32,32], index: 1, kind: input, shape index: {}]
  %s2 = inlined_call_operand.hbm [shape: f32[32,1], index: 2, kind: input, shape index: {}]
  %s3 = inlined_call_operand.hbm [shape: bf16[32,32], index: 3, kind: input, shape index: {}]
  %s4 = inlined_call_operand.hbm [shape: f32[32,1], index: 4, kind: input, shape index: {}]
  %s5 = inlined_call_operand.hbm [shape: f32[4,2,32,256], index: 5, kind: output, shape index: {}]
  %s6 = sld [smem:[#allocation0]]
  $region77: #{ms_mlp_conv_pallas.1} parent=0
    _
  %s8 = ssub.s32 1, %s6
  %s9 = scalar_select 0, %s8, %s6
  $region1: #{ms_mlp_conv_pallas.1} parent=0
    #allocation4 [shape = 'u8[262144]{0}', space=vmem, size = 0x40000, scoped, tag = 'input window, operand 0']
    #allocation5 [shape = 's32[2]{0}', space=sflag, size = 0x8, scoped, tag = 'scoped memory for ms_mlp_conv_pallas.1']
    #allocation6 [shape = 's32[2]{0}', space=sflag, size = 0x8, scoped, tag = 'scoped memory for ms_mlp_conv_pallas.1']
    #allocation7 [shape = 'u8[8192]{0}', space=vmem, size = 0x2000, scoped, tag = 'input window, operand 1, single buffered']
    #allocation8 [shape = 's32[1]{0}', space=sflag, size = 0x4, scoped, tag = 'scoped memory for ms_mlp_conv_pallas.1']
    #allocation9 [shape = 'u8[16384]{0}', space=vmem, size = 0x4000, scoped, tag = 'input window, operand 2, single buffered']
    #allocation10 [shape = 'u8[8192]{0}', space=vmem, size = 0x2000, scoped, tag = 'input window, operand 3, single buffered']
    #allocation11 [shape = 's32[1]{0}', space=sflag, size = 0x4, scoped, tag = 'scoped memory for ms_mlp_conv_pallas.1']
    #allocation12 [shape = 'u8[16384]{0}', space=vmem, size = 0x4000, scoped, tag = 'input window, operand 4, single buffered']
    #allocation13 [shape = 'u8[262144]{0}', space=vmem, size = 0x40000, scoped, tag = 'output window, operand 0']
    %10 = vsyncpa [#allocation5], 0
    %s11 = scalar_lea.sflag [#allocation5], 1
    %12 = vsyncpa %s11, 0
    %13 = vsyncpa [#allocation8], 0
    %14 = vsyncpa [#allocation11], 0
    %15 = vsyncpa [#allocation6], 0
    %s16 = scalar_lea.sflag [#allocation6], 1
    %17 = vsyncpa %s16, 0
    loop: start=0, step=1, limit=4
    $region2: #{ms_mlp_conv_pallas.1} parent=1 // loop_pre_header
      _
    $region3: #{ms_mlp_conv_pallas.1} parent=1 // loop_header
      %s19 = sphi 0, %s23
      %p20 = scmp.ge.s32.totalorder %s19, 4
      %s26 = sphi 0, %s45
      %s27 = sphi 0, %s41
      %s28 = sphi 0, %s37
      %s29 = sphi 0, %s26
      %s30 = sphi 0, %s27
      %s31 = sphi 0, %s28
      %s32 = sphi 0, %s29
      %s33 = sphi 0, %s30
      %s34 = sphi 0, %s31
      %s52 = sphi 0, %s54
      %s55 = sphi 0, %s52
      %s56 = sphi 0, %s55
      %s72 = sphi 0, %s56
      %s76 = sphi 0, %s76
      %s78 = sphi 0, %s76
      %s79 = sphi 0, %s78
      %s93 = sphi 0, %s79
      %s97 = sphi 0, %s97
      %s99 = sphi 0, %s97
      %s100 = sphi 0, %s99
      %s114 = sphi 0, %s100
      %s118 = sphi 0, %s118
      %s120 = sphi 0, %s118
      %s121 = sphi 0, %s120
      %s135 = sphi 0, %s121
      %s139 = sphi 0, %s139
      %s141 = sphi 0, %s139
      %s142 = sphi 0, %s141
      %s156 = sphi 0, %s142
      %s166 = sphi 0, %s168
      %s169 = sphi 0, %s166
      %s170 = sphi 0, %s169
      %s186 = sphi 0, %s170
    $region4: #{ms_mlp_conv_pallas.1} parent=1 // loop_header_branch
      %22 = sbr.rel (%p20) target = $region8
    $region5: #{ms_mlp_conv_pallas.1} parent=1 // loop_body
      %s24 = ssub.s32 %s19, 1
      %s25 = ssub.s32 %s19, 2
      %s35 = sadd.s32 1, %s28
      %p36 = scmp.ge.s32.totalorder %s35, 1
      %s37 = scalar_select %p36, 0, %s35
      %s38 = sadd.s32 1, %s27
      %s39 = scalar_select %p36, %s38, %s27
      %p40 = scmp.ge.s32.totalorder %s39, 1
      %s41 = scalar_select %p40, 0, %s39
      %s42 = sadd.s32 1, %s26
      %s43 = scalar_select %p40, %s42, %s26
      %p44 = scmp.ge.s32.totalorder %s43, 2
      %s45 = scalar_select %p44, 0, %s43
      %s46 = ssub.s32 %s28, %s37
      %s47 = ssub.s32 %s26, %s45
      %s48 = sor.u32 %s46, %s47
      %s49 = ssub.s32 %s27, %s41
      %s50 = sor.u32 %s48, %s49
      %p51 = scmp.eq.s32.totalorder %s50, 0
      %s53 = sadd.s32 %s52, 1
      %s54 = scalar_select %p51, %s52, %s53
      %p57 = pneg %p51
      %p58 = scmp.eq.s32.totalorder %s19, 1
      %p59 = por %p57, %p58
      %p60 = scmp.ne.s32.totalorder %s52, %s55
      %p61 = scmp.eq.s32.totalorder %s19, 0
      %p62 = por %p60, %p61
      %p63 = scmp.ne.s32.totalorder %s52, %s55
      %p64 = scmp.eq.s32.totalorder %s24, 1
      %p65 = por %p63, %p64
      %p66 = scmp.ne.s32.totalorder %s55, %s56
      %p67 = scmp.eq.s32.totalorder %s24, 0
      %p68 = por %p66, %p67
      %p69 = scmp.ne.s32.totalorder %s55, %s56
      %p70 = scmp.eq.s32.totalorder %s25, 1
      %p71 = por %p69, %p70
      %p73 = scmp.ne.s32.totalorder %s56, %s72
      %p74 = scmp.eq.s32.totalorder %s25, 0
      %p75 = por %p73, %p74
      %s77 = sadd.s32 %s76, 1
      %p80 = scmp.eq.s32.totalorder %s19, 1
      %p81 = scmp.ne.s32.totalorder %s76, %s78
      %p82 = scmp.eq.s32.totalorder %s19, 0
      %p83 = por %p81, %p82
      %p84 = scmp.ne.s32.totalorder %s76, %s78
      %p85 = scmp.eq.s32.totalorder %s24, 1
      %p86 = por %p84, %p85
      %p87 = scmp.ne.s32.totalorder %s78, %s79
      %p88 = scmp.eq.s32.totalorder %s24, 0
      %p89 = por %p87, %p88
      %p90 = scmp.ne.s32.totalorder %s78, %s79
      %p91 = scmp.eq.s32.totalorder %s25, 1
      %p92 = por %p90, %p91
      %p94 = scmp.ne.s32.totalorder %s79, %s93
      %p95 = scmp.eq.s32.totalorder %s25, 0
      %p96 = por %p94, %p95
      %s98 = sadd.s32 %s97, 1
      %p101 = scmp.eq.s32.totalorder %s19, 1
      %p102 = scmp.ne.s32.totalorder %s97, %s99
      %p103 = scmp.eq.s32.totalorder %s19, 0
      %p104 = por %p102, %p103
      %p105 = scmp.ne.s32.totalorder %s97, %s99
      %p106 = scmp.eq.s32.totalorder %s24, 1
      %p107 = por %p105, %p106
      %p108 = scmp.ne.s32.totalorder %s99, %s100
      %p109 = scmp.eq.s32.totalorder %s24, 0
      %p110 = por %p108, %p109
      %p111 = scmp.ne.s32.totalorder %s99, %s100
      %p112 = scmp.eq.s32.totalorder %s25, 1
      %p113 = por %p111, %p112
      %p115 = scmp.ne.s32.totalorder %s100, %s114
      %p116 = scmp.eq.s32.totalorder %s25, 0
      %p117 = por %p115, %p116
      %s119 = sadd.s32 %s118, 1
      %p122 = scmp.eq.s32.totalorder %s19, 1
      %p123 = scmp.ne.s32.totalorder %s118, %s120
      %p124 = scmp.eq.s32.totalorder %s19, 0
      %p125 = por %p123, %p124
      %p126 = scmp.ne.s32.totalorder %s118, %s120
      %p127 = scmp.eq.s32.totalorder %s24, 1
      %p128 = por %p126, %p127
      %p129 = scmp.ne.s32.totalorder %s120, %s121
      %p130 = scmp.eq.s32.totalorder %s24, 0
      %p131 = por %p129, %p130
      %p132 = scmp.ne.s32.totalorder %s120, %s121
      %p133 = scmp.eq.s32.totalorder %s25, 1
      %p134 = por %p132, %p133
      %p136 = scmp.ne.s32.totalorder %s121, %s135
      %p137 = scmp.eq.s32.totalorder %s25, 0
      %p138 = por %p136, %p137
      %s140 = sadd.s32 %s139, 1
      %p143 = scmp.eq.s32.totalorder %s19, 1
      %p144 = scmp.ne.s32.totalorder %s139, %s141
      %p145 = scmp.eq.s32.totalorder %s19, 0
      %p146 = por %p144, %p145
      %p147 = scmp.ne.s32.totalorder %s139, %s141
      %p148 = scmp.eq.s32.totalorder %s24, 1
      %p149 = por %p147, %p148
      %p150 = scmp.ne.s32.totalorder %s141, %s142
      %p151 = scmp.eq.s32.totalorder %s24, 0
      %p152 = por %p150, %p151
      %p153 = scmp.ne.s32.totalorder %s141, %s142
      %p154 = scmp.eq.s32.totalorder %s25, 1
      %p155 = por %p153, %p154
      %p157 = scmp.ne.s32.totalorder %s142, %s156
      %p158 = scmp.eq.s32.totalorder %s25, 0
      %p159 = por %p157, %p158
      %s160 = ssub.s32 %s28, %s37
      %s161 = ssub.s32 %s26, %s45
      %s162 = sor.u32 %s160, %s161
      %s163 = ssub.s32 %s27, %s41
      %s164 = sor.u32 %s162, %s163
      %p165 = scmp.eq.s32.totalorder %s164, 0
      %s167 = sadd.s32 %s166, 1
      %s168 = scalar_select %p165, %s166, %s167
      %p171 = pneg %p165
      %p172 = scmp.eq.s32.totalorder %s19, 1
      %p173 = por %p171, %p172
      %p174 = scmp.ne.s32.totalorder %s166, %s169
      %p175 = scmp.eq.s32.totalorder %s19, 0
      %p176 = por %p174, %p175
      %p177 = scmp.ne.s32.totalorder %s166, %s169
      %p178 = scmp.eq.s32.totalorder %s24, 1
      %p179 = por %p177, %p178
      %p180 = scmp.ne.s32.totalorder %s169, %s170
      %p181 = scmp.eq.s32.totalorder %s24, 0
      %p182 = por %p180, %p181
      %p183 = scmp.ne.s32.totalorder %s169, %s170
      %p184 = scmp.eq.s32.totalorder %s25, 1
      %p185 = por %p183, %p184
      %p187 = scmp.ne.s32.totalorder %s170, %s186
      %p188 = scmp.eq.s32.totalorder %s25, 0
      %p189 = por %p187, %p188
      %p190 = scmp.le.s32.totalorder 1, %s19
      %p191 = scmp.lt.s32.totalorder %s19, 3
      %p192 = pnand %p190, %p191
      %p193 = pneg %p192
      // Predicated region
      $region9: #{ms_mlp_conv_pallas.1} parent=5 // pred_check
        _
      $region10: #{ms_mlp_conv_pallas.1} parent=5 // pred_check_branch
        %195 = sbr.rel (%p192) target = $region12
      $region11: #{ms_mlp_conv_pallas.1} parent=5 // pred_region
        %s196 = ssub.s32 %s19, 1
        // Predicated region
        $region13: #{ms_mlp_conv_pallas.1} parent=11 // pred_check
          %p197 = pneg %p89
        $region14: #{ms_mlp_conv_pallas.1} parent=11 // pred_check_branch
          %199 = sbr.rel (%p197) target = $region16
        $region15: #{ms_mlp_conv_pallas.1} parent=11 // pred_region
          %s201 = ssub.s32 256, 256
          %202 = vsyncadd [#allocation8], %s201
          %s203 = sshll.u32 [#allocation7], 4
          %s204 = int_to_ptr.vmem [resolvable:$true] %s203
          %209 = dma.hbm_to_vmem [thread:$0]  %s1, 256, %s204, [#allocation8], 64, 64, 4
        $region16: #{ms_mlp_conv_pallas.1} parent=11 // pred_fallthru
          _
        // Predicated region
        $region17: #{ms_mlp_conv_pallas.1} parent=11 // pred_check
          %p210 = pneg %p110
        $region18: #{ms_mlp_conv_pallas.1} parent=11 // pred_check_branch
          %212 = sbr.rel (%p210) target = $region20
        $region19: #{ms_mlp_conv_pallas.1} parent=11 // pred_region
          %s214 = ssub.s32 512, 512
          %215 = vsyncadd [#allocation8], %s214
          %s216 = sshll.u32 [#allocation9], 4
          %s217 = int_to_ptr.vmem [resolvable:$true] %s216
          %222 = dma.hbm_to_vmem [thread:$0]  %s2, 512, %s217, [#allocation8], 128, 128, 8
        $region20: #{ms_mlp_conv_pallas.1} parent=11 // pred_fallthru
          _
        // Predicated region
        $region21: #{ms_mlp_conv_pallas.1} parent=11 // pred_check
          %p223 = pneg %p131
        $region22: #{ms_mlp_conv_pallas.1} parent=11 // pred_check_branch
          %225 = sbr.rel (%p223) target = $region24
        $region23: #{ms_mlp_conv_pallas.1} parent=11 // pred_region
          %s227 = ssub.s32 256, 256
          %228 = vsyncadd [#allocation11], %s227
          %s229 = sshll.u32 [#allocation10], 4
          %s230 = int_to_ptr.vmem [resolvable:$true] %s229
          %235 = dma.hbm_to_vmem [thread:$0]  %s3, 256, %s230, [#allocation11], 64, 64, 4
        $region24: #{ms_mlp_conv_pallas.1} parent=11 // pred_fallthru
          _
        // Predicated region
        $region25: #{ms_mlp_conv_pallas.1} parent=11 // pred_check
          %p236 = pneg %p152
        $region26: #{ms_mlp_conv_pallas.1} parent=11 // pred_check_branch
          %238 = sbr.rel (%p236) target = $region28
        $region27: #{ms_mlp_conv_pallas.1} parent=11 // pred_region
          %s240 = ssub.s32 512, 512
          %241 = vsyncadd [#allocation11], %s240
          %s242 = sshll.u32 [#allocation12], 4
          %s243 = int_to_ptr.vmem [resolvable:$true] %s242
          %248 = dma.hbm_to_vmem [thread:$0]  %s4, 512, %s243, [#allocation11], 128, 128, 8
        $region28: #{ms_mlp_conv_pallas.1} parent=11 // pred_fallthru
          _
      $region12: #{ms_mlp_conv_pallas.1} parent=5 // pred_fallthru
        _
      %p249 = scmp.lt.s32.totalorder %s19, 2
      // Predicated region
      $region29: #{ms_mlp_conv_pallas.1} parent=5 // pred_check
        %p250 = pneg %p249
      $region30: #{ms_mlp_conv_pallas.1} parent=5 // pred_check_branch
        %252 = sbr.rel (%p250) target = $region32
      $region31: #{ms_mlp_conv_pallas.1} parent=5 // pred_region
        // Predicated region
        $region33: #{ms_mlp_conv_pallas.1} parent=31 // pred_check
          %p253 = pneg %p62
        $region34: #{ms_mlp_conv_pallas.1} parent=31 // pred_check_branch
          %255 = sbr.rel (%p253) target = $region36
        $region35: #{ms_mlp_conv_pallas.1} parent=31 // pred_region
          #allocation15 [shape = 'u32[6]{0}', space=smem, size = 0x18, scoped, tag = 'DMA stride descriptor']
          %s256 = sand.u32 %s52, 1
          %s257 = scalar_lea.sflag [#allocation5], %s256
          %s258 = sand.u32 %s52, 1
          %s259 = smul.addr %s258, 256
          %s260 = scalar_lea.vmem [#allocation4], %s259
          %s261 = smul.u32 4, %s28
          %s262 = smul.u32 2, %s27
          %s264 = ssub.s32 4096, 4096
          %265 = vsyncadd %s257, %s264
          %s266 = smul.addr %s26, 8
          %s267 = sadd.s32 %s262, %s266
          %s268 = smul.addr %s261, 16
          %s269 = sadd.s32 %s267, %s268
          %s270 = smul.addr %s269, 128
          %s271 = scalar_lea.hbm %s0, %s270
          %s273 = sshll.u32 1, 14
          %s274 = sxor.u32 4294967295, %s273
          %s276 = sld [smem:[#allocation0]]
          %s277 = sadd.s32 2, %s276
          %s279 = sshll.u32 7, 26
          %s280 = sxor.u32 4294967295, %s279
          %s281 = sand.u32 0, %s280
          %s282 = sshll.u32 %s277, 26
          %s283 = sor.u32 %s281, %s282
          %s284 = sshll.u32 %s260, 4
          %s285 = int_to_ptr.vmem [resolvable:$true] %s284
          %291 = sst [smem:[#allocation15]] 2048
          %s292 = scalar_lea.smem [#allocation15], 1
          %293 = sst [smem:[%s292]] 1024
          %s294 = scalar_lea.smem [#allocation15], 2
          %295 = sst [smem:[%s294]] 4
          %s296 = scalar_lea.smem [#allocation15], 3
          %297 = sst [smem:[%s296]] 256
          %s298 = scalar_lea.smem [#allocation15], 4
          %299 = sst [smem:[%s298]] 256
          %s300 = scalar_lea.smem [#allocation15], 5
          %301 = sst [smem:[%s300]] 16
          %303 = dma.general %s271, 4096, %s285, %s257, [#allocation14], [#allocation15], %s283, 0
        $region36: #{ms_mlp_conv_pallas.1} parent=31 // pred_fallthru
          _
      $region32: #{ms_mlp_conv_pallas.1} parent=5 // pred_fallthru
        _
      %p304 = scmp.le.s32.totalorder 1, %s19
      %p305 = scmp.lt.s32.totalorder %s19, 3
      %p306 = pnand %p304, %p305
      %p307 = pneg %p306
      // Predicated region
      $region37: #{ms_mlp_conv_pallas.1} parent=5 // pred_check
        _
      $region38: #{ms_mlp_conv_pallas.1} parent=5 // pred_check_branch
        %309 = sbr.rel (%p306) target = $region40
      $region39: #{ms_mlp_conv_pallas.1} parent=5 // pred_region
        %s310 = ssub.s32 %s19, 1
        %s311 = sand.u32 %s55, 1
        %s312 = scalar_lea.sflag [#allocation5], %s311
        %s313 = sand.u32 %s55, 1
        %s314 = smul.addr %s313, 256
        %s315 = scalar_lea.vmem [#allocation4], %s314
        // Predicated region
        $region41: #{ms_mlp_conv_pallas.1} parent=39 // pred_check
          %p316 = pneg %p68
        $region42: #{ms_mlp_conv_pallas.1} parent=39 // pred_check_branch
          %318 = sbr.rel (%p316) target = $region44
        $region43: #{ms_mlp_conv_pallas.1} parent=39 // pred_region
          %319 = dma.done %s312, 4096
        $region44: #{ms_mlp_conv_pallas.1} parent=39 // pred_fallthru
          _
        // Predicated region
        $region45: #{ms_mlp_conv_pallas.1} parent=39 // pred_check
          %p320 = pneg %p89
        $region46: #{ms_mlp_conv_pallas.1} parent=39 // pred_check_branch
          %322 = sbr.rel (%p320) target = $region48
        $region47: #{ms_mlp_conv_pallas.1} parent=39 // pred_region
          %323 = dma.done [#allocation8], 256
        $region48: #{ms_mlp_conv_pallas.1} parent=39 // pred_fallthru
          _
        // Predicated region
        $region49: #{ms_mlp_conv_pallas.1} parent=39 // pred_check
          %p324 = pneg %p110
        $region50: #{ms_mlp_conv_pallas.1} parent=39 // pred_check_branch
          %326 = sbr.rel (%p324) target = $region52
        $region51: #{ms_mlp_conv_pallas.1} parent=39 // pred_region
          %327 = dma.done [#allocation8], 512
        $region52: #{ms_mlp_conv_pallas.1} parent=39 // pred_fallthru
          _
        // Predicated region
        $region53: #{ms_mlp_conv_pallas.1} parent=39 // pred_check
          %p328 = pneg %p131
        $region54: #{ms_mlp_conv_pallas.1} parent=39 // pred_check_branch
          %330 = sbr.rel (%p328) target = $region56
        $region55: #{ms_mlp_conv_pallas.1} parent=39 // pred_region
          %331 = dma.done [#allocation11], 256
        $region56: #{ms_mlp_conv_pallas.1} parent=39 // pred_fallthru
          _
        // Predicated region
        $region57: #{ms_mlp_conv_pallas.1} parent=39 // pred_check
          %p332 = pneg %p152
        $region58: #{ms_mlp_conv_pallas.1} parent=39 // pred_check_branch
          %334 = sbr.rel (%p332) target = $region60
        $region59: #{ms_mlp_conv_pallas.1} parent=39 // pred_region
          %335 = dma.done [#allocation11], 512
        $region60: #{ms_mlp_conv_pallas.1} parent=39 // pred_fallthru
          _
        %s336 = sand.u32 %s55, 1
        %s337 = scalar_lea.sflag [#allocation5], %s336
        %s338 = sand.u32 %s55, 1
        %s339 = smul.addr %s338, 256
        %s340 = scalar_lea.vmem [#allocation4], %s339
        %p341 = pneg %p68
        %p342 = pneg %p65
        %p343 = pneg %p89
        %p344 = pneg %p86
        %p345 = pneg %p110
        %p346 = pneg %p107
        %p347 = pneg %p131
        %p348 = pneg %p128
        %p349 = pneg %p152
        %p350 = pneg %p149
        %p351 = pneg %p182
        %p352 = pneg %p179
        %s353 = sand.u32 %s169, 1
        %s354 = scalar_lea.sflag [#allocation6], %s353
        %s355 = sand.u32 %s169, 1
        %s356 = smul.addr %s355, 256
        %s357 = scalar_lea.vmem [#allocation13], %s356
        %s358 = smul.u32 4, %s31
        %s359 = smul.u32 2, %s30
        %s360 = smul.u32 4, %s31
        %s361 = smul.u32 2, %s30
        %p363 = scmp.eq.s32.totalorder %s31, 0
        // Predicated region
        $region61: #{ms_mlp_conv_pallas.1} parent=39 // pred_check
          %p364 = pneg %p363
        $region62: #{ms_mlp_conv_pallas.1} parent=39 // pred_check_branch
          %366 = sbr.rel (%p364) target = $region64
        $region63: #{ms_mlp_conv_pallas.1} parent=39 // pred_region
          %367 = vst [vmem:[#allocation2] sm:$0xff] 0.0
          %368 = vst [vmem:[#allocation2 + $0x8] sm:$0xff] 0.0
          %369 = vst [vmem:[#allocation2 + $0x10] sm:$0xff] 0.0
          %370 = vst [vmem:[#allocation2 + $0x18] sm:$0xff] 0.0
          %371 = vst [vmem:[#allocation2 + $0x20] sm:$0xff] 0.0
          %372 = vst [vmem:[#allocation2 + $0x28] sm:$0xff] 0.0
          %373 = vst [vmem:[#allocation2 + $0x30] sm:$0xff] 0.0
          %374 = vst [vmem:[#allocation2 + $0x38] sm:$0xff] 0.0
          %375 = vst [vmem:[#allocation3] sm:$0xff] 0.0
          %376 = vst [vmem:[#allocation3 + $0x8] sm:$0xff] 0.0
          %377 = vst [vmem:[#allocation3 + $0x10] sm:$0xff] 0.0
          %378 = vst [vmem:[#allocation3 + $0x18] sm:$0xff] 0.0
          %379 = vst [vmem:[#allocation3 + $0x20] sm:$0xff] 0.0
          %380 = vst [vmem:[#allocation3 + $0x28] sm:$0xff] 0.0
          %381 = vst [vmem:[#allocation3 + $0x30] sm:$0xff] 0.0
          %382 = vst [vmem:[#allocation3 + $0x38] sm:$0xff] 0.0
        $region64: #{ms_mlp_conv_pallas.1} parent=39 // pred_fallthru
          _
        %v383 = vld [vmem:[%s315] sm:$0xff]
        %v384 = vld [vmem:[%s315 + $0x8] sm:$0xff]
        %v385 = vld [vmem:[%s315 + $0x10] sm:$0xff]
        %v386 = vld [vmem:[%s315 + $0x18] sm:$0xff]
        %v387 = vld [vmem:[%s315 + $0x20] sm:$0xff]
        %v388 = vld [vmem:[%s315 + $0x28] sm:$0xff]
        %v389 = vld [vmem:[%s315 + $0x30] sm:$0xff]
        %v390 = vld [vmem:[%s315 + $0x38] sm:$0xff]
        %v391 = vld [vmem:[#allocation2] sm:$0xff]
        %v392 = vld [vmem:[#allocation2 + $0x8] sm:$0xff]
        %v393 = vld [vmem:[#allocation2 + $0x10] sm:$0xff]
        %v394 = vld [vmem:[#allocation2 + $0x18] sm:$0xff]
        %v395 = vld [vmem:[#allocation2 + $0x20] sm:$0xff]
        %v396 = vld [vmem:[#allocation2 + $0x28] sm:$0xff]
        %v397 = vld [vmem:[#allocation2 + $0x30] sm:$0xff]
        %v398 = vld [vmem:[#allocation2 + $0x38] sm:$0xff]
        %v399 = vadd.f32 %v391, %v383
        %v400 = vadd.f32 %v392, %v384
        %v401 = vadd.f32 %v393, %v385
        %v402 = vadd.f32 %v394, %v386
        %v403 = vadd.f32 %v395, %v387
        %v404 = vadd.f32 %v396, %v388
        %v405 = vadd.f32 %v397, %v389
        %v406 = vadd.f32 %v398, %v390
        %v407 = vmul.f32 %v399, 0.5
        %v408 = vmul.f32 %v400, 0.5
        %v409 = vmul.f32 %v401, 0.5
        %v410 = vmul.f32 %v402, 0.5
        %v411 = vmul.f32 %v403, 0.5
        %v412 = vmul.f32 %v404, 0.5
        %v413 = vmul.f32 %v405, 0.5
        %v414 = vmul.f32 %v406, 0.5
        %vm415 = vcmp.ge.f32.partialorder %v407, 1.0
        %vm416 = vcmp.ge.f32.partialorder %v408, 1.0
        %vm417 = vcmp.ge.f32.partialorder %v409, 1.0
        %vm418 = vcmp.ge.f32.partialorder %v410, 1.0
        %vm419 = vcmp.ge.f32.partialorder %v411, 1.0
        %vm420 = vcmp.ge.f32.partialorder %v412, 1.0
        %vm421 = vcmp.ge.f32.partialorder %v413, 1.0
        %vm422 = vcmp.ge.f32.partialorder %v414, 1.0
        %v423 = vsel %vm415, 0.0, %v407
        %v424 = vsel %vm416, 0.0, %v408
        %v425 = vsel %vm417, 0.0, %v409
        %v426 = vsel %vm418, 0.0, %v410
        %v427 = vsel %vm419, 0.0, %v411
        %v428 = vsel %vm420, 0.0, %v412
        %v429 = vsel %vm421, 0.0, %v413
        %v430 = vsel %vm422, 0.0, %v414
        %431 = vst [vmem:[#allocation2] sm:$0xff] %v423
        %432 = vst [vmem:[#allocation2 + $0x8] sm:$0xff] %v424
        %433 = vst [vmem:[#allocation2 + $0x10] sm:$0xff] %v425
        %434 = vst [vmem:[#allocation2 + $0x18] sm:$0xff] %v426
        %435 = vst [vmem:[#allocation2 + $0x20] sm:$0xff] %v427
        %436 = vst [vmem:[#allocation2 + $0x28] sm:$0xff] %v428
        %437 = vst [vmem:[#allocation2 + $0x30] sm:$0xff] %v429
        %438 = vst [vmem:[#allocation2 + $0x38] sm:$0xff] %v430
        %v439 = vsel %vm415, 1, 0
        %v440 = vsel %vm416, 1, 0
        %v441 = vsel %vm417, 1, 0
        %v442 = vsel %vm418, 1, 0
        %v443 = vsel %vm419, 1, 0
        %v444 = vsel %vm420, 1, 0
        %v445 = vsel %vm421, 1, 0
        %v446 = vsel %vm422, 1, 0
        %v447 = vcvt.s32.f32 %v439
        %v448 = vcvt.s32.f32 %v440
        %v449 = vcvt.s32.f32 %v441
        %v450 = vcvt.s32.f32 %v442
        %v451 = vcvt.s32.f32 %v443
        %v452 = vcvt.s32.f32 %v444
        %v453 = vcvt.s32.f32 %v445
        %v454 = vcvt.s32.f32 %v446
        %v455 = vpack.c.bf16 %v449, %v447
        %v456 = vpack.c.bf16 %v450, %v448
        %v457 = vpack.c.bf16 %v453, %v451
        %v458 = vpack.c.bf16 %v454, %v452
        %v459 = vld [vmem:[#allocation7] sm:$0xf]
        %v460 = vld [vmem:[#allocation7 + $0x4] sm:$0xf]
        %v461 = vld [vmem:[#allocation7 + $0x8] sm:$0xf]
        %v462 = vld [vmem:[#allocation7 + $0xc] sm:$0xf]
        %v463 = vld [vmem:[#allocation9] sm:$0xff]
        %v464 = vld [vmem:[#allocation9 + $0x8] sm:$0xff]
        %v465 = vld [vmem:[#allocation9 + $0x10] sm:$0xff]
        %v466 = vld [vmem:[#allocation9 + $0x18] sm:$0xff]
        %468 = vset.pattern.permute.xlu0 0
        %469 = vperm.xlu0 %468, %v463
        %v470 = vpop.permute.xlu0 %469
        %473 = vset.pattern.permute.xlu0 0
        %474 = vperm.xlu0 %473, %v464
        %v475 = vpop.permute.xlu0 %474
        %478 = vset.pattern.permute.xlu0 0
        %479 = vperm.xlu0 %478, %v465
        %v480 = vpop.permute.xlu0 %479
        %483 = vset.pattern.permute.xlu0 0
        %484 = vperm.xlu0 %483, %v466
        %v485 = vpop.permute.xlu0 %484
        %v491 = vunpack.c.l.b16 %v459
        %v492 = vunpack.c.l.b16 %v460
        %v493 = vunpack.c.l.b16 %v461
        %v494 = vunpack.c.l.b16 %v462
        %v495 = vpack.c.b16 %v492, %v491
        %v496 = vpack.c.b16 %v494, %v493
        %vm497 = vcmask 261120
        %v499 = vsel %vm497, %v495, 0
        %v502 = vsel %vm497, %v496, 0
        %504 = vmatprep.subr.bf16.mxu0 %v456
        %505 = vmatpush1.bf16.msra.mxu0 %v455
        %506 = vmatprep.subr.bf16.mxu0 %v458
        %507 = vmatpush1.bf16.msra.mxu0 %v457
        %508 = vmatprep.subr.bf16.mxu0 0
        %509 = vmatpush1.bf16.msra.mxu0 0
        %510 = vmatprep.subr.bf16.mxu0 0
        %511 = vmatpush1.bf16.msra.mxu0 0
        %512 = vmatprep.subr.bf16.mxu0 0
        %513 = vmatpush1.bf16.msra.mxu0 0
        %514 = vmatprep.subr.bf16.mxu0 0
        %515 = vmatpush1.bf16.msra.mxu0 0
        %516 = vmatprep.subr.bf16.mxu0 0
        %517 = vmatpush1.bf16.msra.mxu0 0
        %518 = vmatprep.subr.bf16.mxu0 0
        %519 = vmatpush1.bf16.msra.mxu0 0
        %520 = vmatprep.subr.bf16.mxu0 0
        %521 = vmatpush1.bf16.msra.mxu0 0
        %522 = vmatprep.subr.bf16.mxu0 0
        %523 = vmatpush1.bf16.msra.mxu0 0
        %524 = vmatprep.subr.bf16.mxu0 0
        %525 = vmatpush1.bf16.msra.mxu0 0
        %526 = vmatprep.subr.bf16.mxu0 0
        %527 = vmatpush1.bf16.msra.mxu0 0
        %528 = vmatprep.subr.bf16.mxu0 0
        %529 = vmatpush1.bf16.msra.mxu0 0
        %530 = vmatprep.subr.bf16.mxu0 0
        %531 = vmatpush1.bf16.msra.mxu0 0
        %532 = vmatprep.subr.bf16.mxu0 0
        %533 = vmatpush1.bf16.msra.mxu0 0
        %534 = vmatprep.subr.bf16.mxu0 0
        %535 = vmatpush1.bf16.msra.mxu0 0
        %536 = vmatprep.mubr.bf16.mxu0 0
        %537 = vmatmul.mubr.bf16.gmra.mrb[0].mxu0 %v499
        %v538 = vpop.f32.mrb[0].mxu0
        %v539 = vadd.f32 %v470, %v538
        %v540 = vpop.f32.mrb[0].mxu0
        %v541 = vadd.f32 %v470, %v540
        %v542 = vpop.f32.mrb[0].mxu0
        %v543 = vadd.f32 %v475, %v542
        %v544 = vpop.f32.mrb[0].mxu0
        %v545 = vadd.f32 %v475, %v544
        %546 = vmatprep.mubr.bf16.mxu0 0
        %547 = vmatmul.mubr.bf16.gmra.mrb[0].mxu0 %v502
        %v548 = vpop.f32.mrb[0].mxu0
        %v549 = vadd.f32 %v480, %v548
        %v550 = vpop.f32.mrb[0].mxu0
        %v551 = vadd.f32 %v480, %v550
        %v552 = vpop.f32.mrb[0].mxu0
        %v553 = vadd.f32 %v485, %v552
        %v554 = vpop.f32.mrb[0].mxu0
        %v555 = vadd.f32 %v485, %v554
        %556 = vdwg.mxu0
        %v557 = vadd.f32 %v383, %v539
        %v558 = vadd.f32 %v384, %v541
        %v559 = vadd.f32 %v385, %v543
        %v560 = vadd.f32 %v386, %v545
        %v561 = vadd.f32 %v387, %v549
        %v562 = vadd.f32 %v388, %v551
        %v563 = vadd.f32 %v389, %v553
        %v564 = vadd.f32 %v390, %v555
        %565 = vst [vmem:[%s357] sm:$0xff] %v557
        %566 = vst [vmem:[%s357 + $0x8] sm:$0xff] %v558
        %567 = vst [vmem:[%s357 + $0x10] sm:$0xff] %v559
        %568 = vst [vmem:[%s357 + $0x18] sm:$0xff] %v560
        %569 = vst [vmem:[%s357 + $0x20] sm:$0xff] %v561
        %570 = vst [vmem:[%s357 + $0x28] sm:$0xff] %v562
        %571 = vst [vmem:[%s357 + $0x30] sm:$0xff] %v563
        %572 = vst [vmem:[%s357 + $0x38] sm:$0xff] %v564
        %v573 = vld [vmem:[#allocation3] sm:$0xff]
        %v574 = vld [vmem:[#allocation3 + $0x8] sm:$0xff]
        %v575 = vld [vmem:[#allocation3 + $0x10] sm:$0xff]
        %v576 = vld [vmem:[#allocation3 + $0x18] sm:$0xff]
        %v577 = vld [vmem:[#allocation3 + $0x20] sm:$0xff]
        %v578 = vld [vmem:[#allocation3 + $0x28] sm:$0xff]
        %v579 = vld [vmem:[#allocation3 + $0x30] sm:$0xff]
        %v580 = vld [vmem:[#allocation3 + $0x38] sm:$0xff]
        %v581 = vadd.f32 %v573, %v557
        %v582 = vadd.f32 %v574, %v558
        %v583 = vadd.f32 %v575, %v559
        %v584 = vadd.f32 %v576, %v560
        %v585 = vadd.f32 %v577, %v561
        %v586 = vadd.f32 %v578, %v562
        %v587 = vadd.f32 %v579, %v563
        %v588 = vadd.f32 %v580, %v564
        %v589 = vmul.f32 %v581, 0.5
        %v590 = vmul.f32 %v582, 0.5
        %v591 = vmul.f32 %v583, 0.5
        %v592 = vmul.f32 %v584, 0.5
        %v593 = vmul.f32 %v585, 0.5
        %v594 = vmul.f32 %v586, 0.5
        %v595 = vmul.f32 %v587, 0.5
        %v596 = vmul.f32 %v588, 0.5
        %vm597 = vcmp.ge.f32.partialorder %v589, 1.0
        %vm598 = vcmp.ge.f32.partialorder %v590, 1.0
        %vm599 = vcmp.ge.f32.partialorder %v591, 1.0
        %vm600 = vcmp.ge.f32.partialorder %v592, 1.0
        %vm601 = vcmp.ge.f32.partialorder %v593, 1.0
        %vm602 = vcmp.ge.f32.partialorder %v594, 1.0
        %vm603 = vcmp.ge.f32.partialorder %v595, 1.0
        %vm604 = vcmp.ge.f32.partialorder %v596, 1.0
        %v605 = vsel %vm597, 0.0, %v589
        %v606 = vsel %vm598, 0.0, %v590
        %v607 = vsel %vm599, 0.0, %v591
        %v608 = vsel %vm600, 0.0, %v592
        %v609 = vsel %vm601, 0.0, %v593
        %v610 = vsel %vm602, 0.0, %v594
        %v611 = vsel %vm603, 0.0, %v595
        %v612 = vsel %vm604, 0.0, %v596
        %613 = vst [vmem:[#allocation3] sm:$0xff] %v605
        %614 = vst [vmem:[#allocation3 + $0x8] sm:$0xff] %v606
        %615 = vst [vmem:[#allocation3 + $0x10] sm:$0xff] %v607
        %616 = vst [vmem:[#allocation3 + $0x18] sm:$0xff] %v608
        %617 = vst [vmem:[#allocation3 + $0x20] sm:$0xff] %v609
        %618 = vst [vmem:[#allocation3 + $0x28] sm:$0xff] %v610
        %619 = vst [vmem:[#allocation3 + $0x30] sm:$0xff] %v611
        %620 = vst [vmem:[#allocation3 + $0x38] sm:$0xff] %v612
        %v621 = vsel %vm597, 1, 0
        %v622 = vsel %vm598, 1, 0
        %v623 = vsel %vm599, 1, 0
        %v624 = vsel %vm600, 1, 0
        %v625 = vsel %vm601, 1, 0
        %v626 = vsel %vm602, 1, 0
        %v627 = vsel %vm603, 1, 0
        %v628 = vsel %vm604, 1, 0
        %v629 = vcvt.s32.f32 %v621
        %v630 = vcvt.s32.f32 %v622
        %v631 = vcvt.s32.f32 %v623
        %v632 = vcvt.s32.f32 %v624
        %v633 = vcvt.s32.f32 %v625
        %v634 = vcvt.s32.f32 %v626
        %v635 = vcvt.s32.f32 %v627
        %v636 = vcvt.s32.f32 %v628
        %v637 = vpack.c.bf16 %v631, %v629
        %v638 = vpack.c.bf16 %v632, %v630
        %v639 = vpack.c.bf16 %v635, %v633
        %v640 = vpack.c.bf16 %v636, %v634
        %v641 = vld [vmem:[#allocation10] sm:$0xf]
        %v642 = vld [vmem:[#allocation10 + $0x4] sm:$0xf]
        %v643 = vld [vmem:[#allocation10 + $0x8] sm:$0xf]
        %v644 = vld [vmem:[#allocation10 + $0xc] sm:$0xf]
        %v645 = vld [vmem:[%s357] sm:$0xff]
        %v646 = vld [vmem:[%s357 + $0x8] sm:$0xff]
        %v647 = vld [vmem:[%s357 + $0x10] sm:$0xff]
        %v648 = vld [vmem:[%s357 + $0x18] sm:$0xff]
        %v649 = vld [vmem:[%s357 + $0x20] sm:$0xff]
        %v650 = vld [vmem:[%s357 + $0x28] sm:$0xff]
        %v651 = vld [vmem:[%s357 + $0x30] sm:$0xff]
        %v652 = vld [vmem:[%s357 + $0x38] sm:$0xff]
        %v653 = vld [vmem:[#allocation12] sm:$0xff]
        %v654 = vld [vmem:[#allocation12 + $0x8] sm:$0xff]
        %v655 = vld [vmem:[#allocation12 + $0x10] sm:$0xff]
        %v656 = vld [vmem:[#allocation12 + $0x18] sm:$0xff]
        %658 = vset.pattern.permute.xlu0 0
        %659 = vperm.xlu0 %658, %v653
        %v660 = vpop.permute.xlu0 %659
        %663 = vset.pattern.permute.xlu0 0
        %664 = vperm.xlu0 %663, %v654
        %v665 = vpop.permute.xlu0 %664
        %668 = vset.pattern.permute.xlu0 0
        %669 = vperm.xlu0 %668, %v655
        %v670 = vpop.permute.xlu0 %669
        %673 = vset.pattern.permute.xlu0 0
        %674 = vperm.xlu0 %673, %v656
        %v675 = vpop.permute.xlu0 %674
        %v681 = vunpack.c.l.b16 %v641
        %v682 = vunpack.c.l.b16 %v642
        %v683 = vunpack.c.l.b16 %v643
        %v684 = vunpack.c.l.b16 %v644
        %v685 = vpack.c.b16 %v682, %v681
        %v686 = vpack.c.b16 %v684, %v683
        %v688 = vsel %vm497, %v685, 0
        %v691 = vsel %vm497, %v686, 0
        %693 = vmatprep.subr.bf16.mxu0 %v638
        %694 = vmatpush1.bf16.msra.mxu0 %v637
        %695 = vmatprep.subr.bf16.mxu0 %v640
        %696 = vmatpush1.bf16.msra.mxu0 %v639
        %697 = vmatprep.subr.bf16.mxu0 0
        %698 = vmatpush1.bf16.msra.mxu0 0
        %699 = vmatprep.subr.bf16.mxu0 0
        %700 = vmatpush1.bf16.msra.mxu0 0
        %701 = vmatprep.subr.bf16.mxu0 0
        %702 = vmatpush1.bf16.msra.mxu0 0
        %703 = vmatprep.subr.bf16.mxu0 0
        %704 = vmatpush1.bf16.msra.mxu0 0
        %705 = vmatprep.subr.bf16.mxu0 0
        %706 = vmatpush1.bf16.msra.mxu0 0
        %707 = vmatprep.subr.bf16.mxu0 0
        %708 = vmatpush1.bf16.msra.mxu0 0
        %709 = vmatprep.subr.bf16.mxu0 0
        %710 = vmatpush1.bf16.msra.mxu0 0
        %711 = vmatprep.subr.bf16.mxu0 0
        %712 = vmatpush1.bf16.msra.mxu0 0
        %713 = vmatprep.subr.bf16.mxu0 0
        %714 = vmatpush1.bf16.msra.mxu0 0
        %715 = vmatprep.subr.bf16.mxu0 0
        %716 = vmatpush1.bf16.msra.mxu0 0
        %717 = vmatprep.subr.bf16.mxu0 0
        %718 = vmatpush1.bf16.msra.mxu0 0
        %719 = vmatprep.subr.bf16.mxu0 0
        %720 = vmatpush1.bf16.msra.mxu0 0
        %721 = vmatprep.subr.bf16.mxu0 0
        %722 = vmatpush1.bf16.msra.mxu0 0
        %723 = vmatprep.subr.bf16.mxu0 0
        %724 = vmatpush1.bf16.msra.mxu0 0
        %725 = vmatprep.mubr.bf16.mxu0 0
        %726 = vmatmul.mubr.bf16.gmra.mrb[0].mxu0 %v688
        %v727 = vpop.f32.mrb[0].mxu0
        %v728 = vadd.f32 %v660, %v727
        %v729 = vpop.f32.mrb[0].mxu0
        %v730 = vadd.f32 %v660, %v729
        %v731 = vpop.f32.mrb[0].mxu0
        %v732 = vadd.f32 %v665, %v731
        %v733 = vpop.f32.mrb[0].mxu0
        %v734 = vadd.f32 %v665, %v733
        %735 = vmatprep.mubr.bf16.mxu0 0
        %736 = vmatmul.mubr.bf16.gmra.mrb[0].mxu0 %v691
        %v737 = vpop.f32.mrb[0].mxu0
        %v738 = vadd.f32 %v670, %v737
        %v739 = vpop.f32.mrb[0].mxu0
        %v740 = vadd.f32 %v670, %v739
        %v741 = vpop.f32.mrb[0].mxu0
        %v742 = vadd.f32 %v675, %v741
        %v743 = vpop.f32.mrb[0].mxu0
        %v744 = vadd.f32 %v675, %v743
        %745 = vdwg.mxu0
        %v746 = vadd.f32 %v645, %v728
        %v747 = vadd.f32 %v646, %v730
        %v748 = vadd.f32 %v647, %v732
        %v749 = vadd.f32 %v648, %v734
        %v750 = vadd.f32 %v649, %v738
        %v751 = vadd.f32 %v650, %v740
        %v752 = vadd.f32 %v651, %v742
        %v753 = vadd.f32 %v652, %v744
        %754 = vst [vmem:[%s357] sm:$0xff] %v746
        %755 = vst [vmem:[%s357 + $0x8] sm:$0xff] %v747
        %756 = vst [vmem:[%s357 + $0x10] sm:$0xff] %v748
        %757 = vst [vmem:[%s357 + $0x18] sm:$0xff] %v749
        %758 = vst [vmem:[%s357 + $0x20] sm:$0xff] %v750
        %759 = vst [vmem:[%s357 + $0x28] sm:$0xff] %v751
        %760 = vst [vmem:[%s357 + $0x30] sm:$0xff] %v752
        %761 = vst [vmem:[%s357 + $0x38] sm:$0xff] %v753
        %s762 = scalar_lea.vmem %s315, 64 [#allocation4]
        %v763 = vld [vmem:[%s762] sm:$0xff]
        %v764 = vld [vmem:[%s762 + $0x8] sm:$0xff]
        %v765 = vld [vmem:[%s762 + $0x10] sm:$0xff]
        %v766 = vld [vmem:[%s762 + $0x18] sm:$0xff]
        %v767 = vld [vmem:[%s762 + $0x20] sm:$0xff]
        %v768 = vld [vmem:[%s762 + $0x28] sm:$0xff]
        %v769 = vld [vmem:[%s762 + $0x30] sm:$0xff]
        %v770 = vld [vmem:[%s762 + $0x38] sm:$0xff]
        %v771 = vld [vmem:[#allocation2] sm:$0xff]
        %v772 = vld [vmem:[#allocation2 + $0x8] sm:$0xff]
        %v773 = vld [vmem:[#allocation2 + $0x10] sm:$0xff]
        %v774 = vld [vmem:[#allocation2 + $0x18] sm:$0xff]
        %v775 = vld [vmem:[#allocation2 + $0x20] sm:$0xff]
        %v776 = vld [vmem:[#allocation2 + $0x28] sm:$0xff]
        %v777 = vld [vmem:[#allocation2 + $0x30] sm:$0xff]
        %v778 = vld [vmem:[#allocation2 + $0x38] sm:$0xff]
        %v779 = vadd.f32 %v771, %v763
        %v780 = vadd.f32 %v772, %v764
        %v781 = vadd.f32 %v773, %v765
        %v782 = vadd.f32 %v774, %v766
        %v783 = vadd.f32 %v775, %v767
        %v784 = vadd.f32 %v776, %v768
        %v785 = vadd.f32 %v777, %v769
        %v786 = vadd.f32 %v778, %v770
        %v787 = vmul.f32 %v779, 0.5
        %v788 = vmul.f32 %v780, 0.5
        %v789 = vmul.f32 %v781, 0.5
        %v790 = vmul.f32 %v782, 0.5
        %v791 = vmul.f32 %v783, 0.5
        %v792 = vmul.f32 %v784, 0.5
        %v793 = vmul.f32 %v785, 0.5
        %v794 = vmul.f32 %v786, 0.5
        %vm795 = vcmp.ge.f32.partialorder %v787, 1.0
        %vm796 = vcmp.ge.f32.partialorder %v788, 1.0
        %vm797 = vcmp.ge.f32.partialorder %v789, 1.0
        %vm798 = vcmp.ge.f32.partialorder %v790, 1.0
        %vm799 = vcmp.ge.f32.partialorder %v791, 1.0
        %vm800 = vcmp.ge.f32.partialorder %v792, 1.0
        %vm801 = vcmp.ge.f32.partialorder %v793, 1.0
        %vm802 = vcmp.ge.f32.partialorder %v794, 1.0
        %v803 = vsel %vm795, 0.0, %v787
        %v804 = vsel %vm796, 0.0, %v788
        %v805 = vsel %vm797, 0.0, %v789
        %v806 = vsel %vm798, 0.0, %v790
        %v807 = vsel %vm799, 0.0, %v791
        %v808 = vsel %vm800, 0.0, %v792
        %v809 = vsel %vm801, 0.0, %v793
        %v810 = vsel %vm802, 0.0, %v794
        %811 = vst [vmem:[#allocation2] sm:$0xff] %v803
        %812 = vst [vmem:[#allocation2 + $0x8] sm:$0xff] %v804
        %813 = vst [vmem:[#allocation2 + $0x10] sm:$0xff] %v805
        %814 = vst [vmem:[#allocation2 + $0x18] sm:$0xff] %v806
        %815 = vst [vmem:[#allocation2 + $0x20] sm:$0xff] %v807
        %816 = vst [vmem:[#allocation2 + $0x28] sm:$0xff] %v808
        %817 = vst [vmem:[#allocation2 + $0x30] sm:$0xff] %v809
        %818 = vst [vmem:[#allocation2 + $0x38] sm:$0xff] %v810
        %v819 = vsel %vm795, 1, 0
        %v820 = vsel %vm796, 1, 0
        %v821 = vsel %vm797, 1, 0
        %v822 = vsel %vm798, 1, 0
        %v823 = vsel %vm799, 1, 0
        %v824 = vsel %vm800, 1, 0
        %v825 = vsel %vm801, 1, 0
        %v826 = vsel %vm802, 1, 0
        %v827 = vcvt.s32.f32 %v819
        %v828 = vcvt.s32.f32 %v820
        %v829 = vcvt.s32.f32 %v821
        %v830 = vcvt.s32.f32 %v822
        %v831 = vcvt.s32.f32 %v823
        %v832 = vcvt.s32.f32 %v824
        %v833 = vcvt.s32.f32 %v825
        %v834 = vcvt.s32.f32 %v826
        %v835 = vpack.c.bf16 %v829, %v827
        %v836 = vpack.c.bf16 %v830, %v828
        %v837 = vpack.c.bf16 %v833, %v831
        %v838 = vpack.c.bf16 %v834, %v832
        %v839 = vld [vmem:[#allocation7] sm:$0xf]
        %v840 = vld [vmem:[#allocation7 + $0x4] sm:$0xf]
        %v841 = vld [vmem:[#allocation7 + $0x8] sm:$0xf]
        %v842 = vld [vmem:[#allocation7 + $0xc] sm:$0xf]
        %v843 = vld [vmem:[#allocation9] sm:$0xff]
        %v844 = vld [vmem:[#allocation9 + $0x8] sm:$0xff]
        %v845 = vld [vmem:[#allocation9 + $0x10] sm:$0xff]
        %v846 = vld [vmem:[#allocation9 + $0x18] sm:$0xff]
        %848 = vset.pattern.permute.xlu0 0
        %849 = vperm.xlu0 %848, %v843
        %v850 = vpop.permute.xlu0 %849
        %853 = vset.pattern.permute.xlu0 0
        %854 = vperm.xlu0 %853, %v844
        %v855 = vpop.permute.xlu0 %854
        %858 = vset.pattern.permute.xlu0 0
        %859 = vperm.xlu0 %858, %v845
        %v860 = vpop.permute.xlu0 %859
        %863 = vset.pattern.permute.xlu0 0
        %864 = vperm.xlu0 %863, %v846
        %v865 = vpop.permute.xlu0 %864
        %v871 = vunpack.c.l.b16 %v839
        %v872 = vunpack.c.l.b16 %v840
        %v873 = vunpack.c.l.b16 %v841
        %v874 = vunpack.c.l.b16 %v842
        %v875 = vpack.c.b16 %v872, %v871
        %v876 = vpack.c.b16 %v874, %v873
        %v878 = vsel %vm497, %v875, 0
        %v881 = vsel %vm497, %v876, 0
        %883 = vmatprep.subr.bf16.mxu0 %v836
        %884 = vmatpush1.bf16.msra.mxu0 %v835
        %885 = vmatprep.subr.bf16.mxu0 %v838
        %886 = vmatpush1.bf16.msra.mxu0 %v837
        %887 = vmatprep.subr.bf16.mxu0 0
        %888 = vmatpush1.bf16.msra.mxu0 0
        %889 = vmatprep.subr.bf16.mxu0 0
        %890 = vmatpush1.bf16.msra.mxu0 0
        %891 = vmatprep.subr.bf16.mxu0 0
        %892 = vmatpush1.bf16.msra.mxu0 0
        %893 = vmatprep.subr.bf16.mxu0 0
        %894 = vmatpush1.bf16.msra.mxu0 0
        %895 = vmatprep.subr.bf16.mxu0 0
        %896 = vmatpush1.bf16.msra.mxu0 0
        %897 = vmatprep.subr.bf16.mxu0 0
        %898 = vmatpush1.bf16.msra.mxu0 0
        %899 = vmatprep.subr.bf16.mxu0 0
        %900 = vmatpush1.bf16.msra.mxu0 0
        %901 = vmatprep.subr.bf16.mxu0 0
        %902 = vmatpush1.bf16.msra.mxu0 0
        %903 = vmatprep.subr.bf16.mxu0 0
        %904 = vmatpush1.bf16.msra.mxu0 0
        %905 = vmatprep.subr.bf16.mxu0 0
        %906 = vmatpush1.bf16.msra.mxu0 0
        %907 = vmatprep.subr.bf16.mxu0 0
        %908 = vmatpush1.bf16.msra.mxu0 0
        %909 = vmatprep.subr.bf16.mxu0 0
        %910 = vmatpush1.bf16.msra.mxu0 0
        %911 = vmatprep.subr.bf16.mxu0 0
        %912 = vmatpush1.bf16.msra.mxu0 0
        %913 = vmatprep.subr.bf16.mxu0 0
        %914 = vmatpush1.bf16.msra.mxu0 0
        %915 = vmatprep.mubr.bf16.mxu0 0
        %916 = vmatmul.mubr.bf16.gmra.mrb[0].mxu0 %v878
        %v917 = vpop.f32.mrb[0].mxu0
        %v918 = vadd.f32 %v850, %v917
        %v919 = vpop.f32.mrb[0].mxu0
        %v920 = vadd.f32 %v850, %v919
        %v921 = vpop.f32.mrb[0].mxu0
        %v922 = vadd.f32 %v855, %v921
        %v923 = vpop.f32.mrb[0].mxu0
        %v924 = vadd.f32 %v855, %v923
        %925 = vmatprep.mubr.bf16.mxu0 0
        %926 = vmatmul.mubr.bf16.gmra.mrb[0].mxu0 %v881
        %v927 = vpop.f32.mrb[0].mxu0
        %v928 = vadd.f32 %v860, %v927
        %v929 = vpop.f32.mrb[0].mxu0
        %v930 = vadd.f32 %v860, %v929
        %v931 = vpop.f32.mrb[0].mxu0
        %v932 = vadd.f32 %v865, %v931
        %v933 = vpop.f32.mrb[0].mxu0
        %v934 = vadd.f32 %v865, %v933
        %935 = vdwg.mxu0
        %v936 = vadd.f32 %v763, %v918
        %v937 = vadd.f32 %v764, %v920
        %v938 = vadd.f32 %v765, %v922
        %v939 = vadd.f32 %v766, %v924
        %v940 = vadd.f32 %v767, %v928
        %v941 = vadd.f32 %v768, %v930
        %v942 = vadd.f32 %v769, %v932
        %v943 = vadd.f32 %v770, %v934
        %s944 = scalar_lea.vmem %s357, 64 [#allocation13]
        %945 = vst [vmem:[%s944] sm:$0xff] %v936
        %946 = vst [vmem:[%s944 + $0x8] sm:$0xff] %v937
        %947 = vst [vmem:[%s944 + $0x10] sm:$0xff] %v938
        %948 = vst [vmem:[%s944 + $0x18] sm:$0xff] %v939
        %949 = vst [vmem:[%s944 + $0x20] sm:$0xff] %v940
        %950 = vst [vmem:[%s944 + $0x28] sm:$0xff] %v941
        %951 = vst [vmem:[%s944 + $0x30] sm:$0xff] %v942
        %952 = vst [vmem:[%s944 + $0x38] sm:$0xff] %v943
        %v953 = vld [vmem:[#allocation3] sm:$0xff]
        %v954 = vld [vmem:[#allocation3 + $0x8] sm:$0xff]
        %v955 = vld [vmem:[#allocation3 + $0x10] sm:$0xff]
        %v956 = vld [vmem:[#allocation3 + $0x18] sm:$0xff]
        %v957 = vld [vmem:[#allocation3 + $0x20] sm:$0xff]
        %v958 = vld [vmem:[#allocation3 + $0x28] sm:$0xff]
        %v959 = vld [vmem:[#allocation3 + $0x30] sm:$0xff]
        %v960 = vld [vmem:[#allocation3 + $0x38] sm:$0xff]
        %v961 = vadd.f32 %v953, %v936
        %v962 = vadd.f32 %v954, %v937
        %v963 = vadd.f32 %v955, %v938
        %v964 = vadd.f32 %v956, %v939
        %v965 = vadd.f32 %v957, %v940
        %v966 = vadd.f32 %v958, %v941
        %v967 = vadd.f32 %v959, %v942
        %v968 = vadd.f32 %v960, %v943
        %v969 = vmul.f32 %v961, 0.5
        %v970 = vmul.f32 %v962, 0.5
        %v971 = vmul.f32 %v963, 0.5
        %v972 = vmul.f32 %v964, 0.5
        %v973 = vmul.f32 %v965, 0.5
        %v974 = vmul.f32 %v966, 0.5
        %v975 = vmul.f32 %v967, 0.5
        %v976 = vmul.f32 %v968, 0.5
        %vm977 = vcmp.ge.f32.partialorder %v969, 1.0
        %vm978 = vcmp.ge.f32.partialorder %v970, 1.0
        %vm979 = vcmp.ge.f32.partialorder %v971, 1.0
        %vm980 = vcmp.ge.f32.partialorder %v972, 1.0
        %vm981 = vcmp.ge.f32.partialorder %v973, 1.0
        %vm982 = vcmp.ge.f32.partialorder %v974, 1.0
        %vm983 = vcmp.ge.f32.partialorder %v975, 1.0
        %vm984 = vcmp.ge.f32.partialorder %v976, 1.0
        %v985 = vsel %vm977, 0.0, %v969
        %v986 = vsel %vm978, 0.0, %v970
        %v987 = vsel %vm979, 0.0, %v971
        %v988 = vsel %vm980, 0.0, %v972
        %v989 = vsel %vm981, 0.0, %v973
        %v990 = vsel %vm982, 0.0, %v974
        %v991 = vsel %vm983, 0.0, %v975
        %v992 = vsel %vm984, 0.0, %v976
        %993 = vst [vmem:[#allocation3] sm:$0xff] %v985
        %994 = vst [vmem:[#allocation3 + $0x8] sm:$0xff] %v986
        %995 = vst [vmem:[#allocation3 + $0x10] sm:$0xff] %v987
        %996 = vst [vmem:[#allocation3 + $0x18] sm:$0xff] %v988
        %997 = vst [vmem:[#allocation3 + $0x20] sm:$0xff] %v989
        %998 = vst [vmem:[#allocation3 + $0x28] sm:$0xff] %v990
        %999 = vst [vmem:[#allocation3 + $0x30] sm:$0xff] %v991
        %1000 = vst [vmem:[#allocation3 + $0x38] sm:$0xff] %v992
        %v1001 = vsel %vm977, 1, 0
        %v1002 = vsel %vm978, 1, 0
        %v1003 = vsel %vm979, 1, 0
        %v1004 = vsel %vm980, 1, 0
        %v1005 = vsel %vm981, 1, 0
        %v1006 = vsel %vm982, 1, 0
        %v1007 = vsel %vm983, 1, 0
        %v1008 = vsel %vm984, 1, 0
        %v1009 = vcvt.s32.f32 %v1001
        %v1010 = vcvt.s32.f32 %v1002
        %v1011 = vcvt.s32.f32 %v1003
        %v1012 = vcvt.s32.f32 %v1004
        %v1013 = vcvt.s32.f32 %v1005
        %v1014 = vcvt.s32.f32 %v1006
        %v1015 = vcvt.s32.f32 %v1007
        %v1016 = vcvt.s32.f32 %v1008
        %v1017 = vpack.c.bf16 %v1011, %v1009
        %v1018 = vpack.c.bf16 %v1012, %v1010
        %v1019 = vpack.c.bf16 %v1015, %v1013
        %v1020 = vpack.c.bf16 %v1016, %v1014
        %v1021 = vld [vmem:[#allocation10] sm:$0xf]
        %v1022 = vld [vmem:[#allocation10 + $0x4] sm:$0xf]
        %v1023 = vld [vmem:[#allocation10 + $0x8] sm:$0xf]
        %v1024 = vld [vmem:[#allocation10 + $0xc] sm:$0xf]
        %v1025 = vld [vmem:[%s944] sm:$0xff]
        %v1026 = vld [vmem:[%s944 + $0x8] sm:$0xff]
        %v1027 = vld [vmem:[%s944 + $0x10] sm:$0xff]
        %v1028 = vld [vmem:[%s944 + $0x18] sm:$0xff]
        %v1029 = vld [vmem:[%s944 + $0x20] sm:$0xff]
        %v1030 = vld [vmem:[%s944 + $0x28] sm:$0xff]
        %v1031 = vld [vmem:[%s944 + $0x30] sm:$0xff]
        %v1032 = vld [vmem:[%s944 + $0x38] sm:$0xff]
        %v1033 = vld [vmem:[#allocation12] sm:$0xff]
        %v1034 = vld [vmem:[#allocation12 + $0x8] sm:$0xff]
        %v1035 = vld [vmem:[#allocation12 + $0x10] sm:$0xff]
        %v1036 = vld [vmem:[#allocation12 + $0x18] sm:$0xff]
        %1038 = vset.pattern.permute.xlu0 0
        %1039 = vperm.xlu0 %1038, %v1033
        %v1040 = vpop.permute.xlu0 %1039
        %1043 = vset.pattern.permute.xlu0 0
        %1044 = vperm.xlu0 %1043, %v1034
        %v1045 = vpop.permute.xlu0 %1044
        %1048 = vset.pattern.permute.xlu0 0
        %1049 = vperm.xlu0 %1048, %v1035
        %v1050 = vpop.permute.xlu0 %1049
        %1053 = vset.pattern.permute.xlu0 0
        %1054 = vperm.xlu0 %1053, %v1036
        %v1055 = vpop.permute.xlu0 %1054
        %v1061 = vunpack.c.l.b16 %v1021
        %v1062 = vunpack.c.l.b16 %v1022
        %v1063 = vunpack.c.l.b16 %v1023
        %v1064 = vunpack.c.l.b16 %v1024
        %v1065 = vpack.c.b16 %v1062, %v1061
        %v1066 = vpack.c.b16 %v1064, %v1063
        %v1068 = vsel %vm497, %v1065, 0
        %v1071 = vsel %vm497, %v1066, 0
        %1073 = vmatprep.subr.bf16.mxu0 %v1018
        %1074 = vmatpush1.bf16.msra.mxu0 %v1017
        %1075 = vmatprep.subr.bf16.mxu0 %v1020
        %1076 = vmatpush1.bf16.msra.mxu0 %v1019
        %1077 = vmatprep.subr.bf16.mxu0 0
        %1078 = vmatpush1.bf16.msra.mxu0 0
        %1079 = vmatprep.subr.bf16.mxu0 0
        %1080 = vmatpush1.bf16.msra.mxu0 0
        %1081 = vmatprep.subr.bf16.mxu0 0
        %1082 = vmatpush1.bf16.msra.mxu0 0
        %1083 = vmatprep.subr.bf16.mxu0 0
        %1084 = vmatpush1.bf16.msra.mxu0 0
        %1085 = vmatprep.subr.bf16.mxu0 0
        %1086 = vmatpush1.bf16.msra.mxu0 0
        %1087 = vmatprep.subr.bf16.mxu0 0
        %1088 = vmatpush1.bf16.msra.mxu0 0
        %1089 = vmatprep.subr.bf16.mxu0 0
        %1090 = vmatpush1.bf16.msra.mxu0 0
        %1091 = vmatprep.subr.bf16.mxu0 0
        %1092 = vmatpush1.bf16.msra.mxu0 0
        %1093 = vmatprep.subr.bf16.mxu0 0
        %1094 = vmatpush1.bf16.msra.mxu0 0
        %1095 = vmatprep.subr.bf16.mxu0 0
        %1096 = vmatpush1.bf16.msra.mxu0 0
        %1097 = vmatprep.subr.bf16.mxu0 0
        %1098 = vmatpush1.bf16.msra.mxu0 0
        %1099 = vmatprep.subr.bf16.mxu0 0
        %1100 = vmatpush1.bf16.msra.mxu0 0
        %1101 = vmatprep.subr.bf16.mxu0 0
        %1102 = vmatpush1.bf16.msra.mxu0 0
        %1103 = vmatprep.subr.bf16.mxu0 0
        %1104 = vmatpush1.bf16.msra.mxu0 0
        %1105 = vmatprep.mubr.bf16.mxu0 0
        %1106 = vmatmul.mubr.bf16.gmra.mrb[0].mxu0 %v1068
        %v1107 = vpop.f32.mrb[0].mxu0
        %v1108 = vadd.f32 %v1040, %v1107
        %v1109 = vpop.f32.mrb[0].mxu0
        %v1110 = vadd.f32 %v1040, %v1109
        %v1111 = vpop.f32.mrb[0].mxu0
        %v1112 = vadd.f32 %v1045, %v1111
        %v1113 = vpop.f32.mrb[0].mxu0
        %v1114 = vadd.f32 %v1045, %v1113
        %1115 = vmatprep.mubr.bf16.mxu0 0
        %1116 = vmatmul.mubr.bf16.gmra.mrb[0].mxu0 %v1071
        %v1117 = vpop.f32.mrb[0].mxu0
        %v1118 = vadd.f32 %v1050, %v1117
        %v1119 = vpop.f32.mrb[0].mxu0
        %v1120 = vadd.f32 %v1050, %v1119
        %v1121 = vpop.f32.mrb[0].mxu0
        %v1122 = vadd.f32 %v1055, %v1121
        %v1123 = vpop.f32.mrb[0].mxu0
        %v1124 = vadd.f32 %v1055, %v1123
        %1125 = vdwg.mxu0
        %v1126 = vadd.f32 %v1025, %v1108
        %v1127 = vadd.f32 %v1026, %v1110
        %v1128 = vadd.f32 %v1027, %v1112
        %v1129 = vadd.f32 %v1028, %v1114
        %v1130 = vadd.f32 %v1029, %v1118
        %v1131 = vadd.f32 %v1030, %v1120
        %v1132 = vadd.f32 %v1031, %v1122
        %v1133 = vadd.f32 %v1032, %v1124
        %1134 = vst [vmem:[%s944] sm:$0xff] %v1126
        %1135 = vst [vmem:[%s944 + $0x8] sm:$0xff] %v1127
        %1136 = vst [vmem:[%s944 + $0x10] sm:$0xff] %v1128
        %1137 = vst [vmem:[%s944 + $0x18] sm:$0xff] %v1129
        %1138 = vst [vmem:[%s944 + $0x20] sm:$0xff] %v1130
        %1139 = vst [vmem:[%s944 + $0x28] sm:$0xff] %v1131
        %1140 = vst [vmem:[%s944 + $0x30] sm:$0xff] %v1132
        %1141 = vst [vmem:[%s944 + $0x38] sm:$0xff] %v1133
        %s1142 = scalar_lea.vmem %s315, 128 [#allocation4]
        %v1143 = vld [vmem:[%s1142] sm:$0xff]
        %v1144 = vld [vmem:[%s1142 + $0x8] sm:$0xff]
        %v1145 = vld [vmem:[%s1142 + $0x10] sm:$0xff]
        %v1146 = vld [vmem:[%s1142 + $0x18] sm:$0xff]
        %v1147 = vld [vmem:[%s1142 + $0x20] sm:$0xff]
        %v1148 = vld [vmem:[%s1142 + $0x28] sm:$0xff]
        %v1149 = vld [vmem:[%s1142 + $0x30] sm:$0xff]
        %v1150 = vld [vmem:[%s1142 + $0x38] sm:$0xff]
        %v1151 = vld [vmem:[#allocation2] sm:$0xff]
        %v1152 = vld [vmem:[#allocation2 + $0x8] sm:$0xff]
        %v1153 = vld [vmem:[#allocation2 + $0x10] sm:$0xff]
        %v1154 = vld [vmem:[#allocation2 + $0x18] sm:$0xff]
        %v1155 = vld [vmem:[#allocation2 + $0x20] sm:$0xff]
        %v1156 = vld [vmem:[#allocation2 + $0x28] sm:$0xff]
        %v1157 = vld [vmem:[#allocation2 + $0x30] sm:$0xff]
        %v1158 = vld [vmem:[#allocation2 + $0x38] sm:$0xff]
        %v1159 = vadd.f32 %v1151, %v1143
        %v1160 = vadd.f32 %v1152, %v1144
        %v1161 = vadd.f32 %v1153, %v1145
        %v1162 = vadd.f32 %v1154, %v1146
        %v1163 = vadd.f32 %v1155, %v1147
        %v1164 = vadd.f32 %v1156, %v1148
        %v1165 = vadd.f32 %v1157, %v1149
        %v1166 = vadd.f32 %v1158, %v1150
        %v1167 = vmul.f32 %v1159, 0.5
        %v1168 = vmul.f32 %v1160, 0.5
        %v1169 = vmul.f32 %v1161, 0.5
        %v1170 = vmul.f32 %v1162, 0.5
        %v1171 = vmul.f32 %v1163, 0.5
        %v1172 = vmul.f32 %v1164, 0.5
        %v1173 = vmul.f32 %v1165, 0.5
        %v1174 = vmul.f32 %v1166, 0.5
        %vm1175 = vcmp.ge.f32.partialorder %v1167, 1.0
        %vm1176 = vcmp.ge.f32.partialorder %v1168, 1.0
        %vm1177 = vcmp.ge.f32.partialorder %v1169, 1.0
        %vm1178 = vcmp.ge.f32.partialorder %v1170, 1.0
        %vm1179 = vcmp.ge.f32.partialorder %v1171, 1.0
        %vm1180 = vcmp.ge.f32.partialorder %v1172, 1.0
        %vm1181 = vcmp.ge.f32.partialorder %v1173, 1.0
        %vm1182 = vcmp.ge.f32.partialorder %v1174, 1.0
        %v1183 = vsel %vm1175, 0.0, %v1167
        %v1184 = vsel %vm1176, 0.0, %v1168
        %v1185 = vsel %vm1177, 0.0, %v1169
        %v1186 = vsel %vm1178, 0.0, %v1170
        %v1187 = vsel %vm1179, 0.0, %v1171
        %v1188 = vsel %vm1180, 0.0, %v1172
        %v1189 = vsel %vm1181, 0.0, %v1173
        %v1190 = vsel %vm1182, 0.0, %v1174
        %1191 = vst [vmem:[#allocation2] sm:$0xff] %v1183
        %1192 = vst [vmem:[#allocation2 + $0x8] sm:$0xff] %v1184
        %1193 = vst [vmem:[#allocation2 + $0x10] sm:$0xff] %v1185
        %1194 = vst [vmem:[#allocation2 + $0x18] sm:$0xff] %v1186
        %1195 = vst [vmem:[#allocation2 + $0x20] sm:$0xff] %v1187
        %1196 = vst [vmem:[#allocation2 + $0x28] sm:$0xff] %v1188
        %1197 = vst [vmem:[#allocation2 + $0x30] sm:$0xff] %v1189
        %1198 = vst [vmem:[#allocation2 + $0x38] sm:$0xff] %v1190
        %v1199 = vsel %vm1175, 1, 0
        %v1200 = vsel %vm1176, 1, 0
        %v1201 = vsel %vm1177, 1, 0
        %v1202 = vsel %vm1178, 1, 0
        %v1203 = vsel %vm1179, 1, 0
        %v1204 = vsel %vm1180, 1, 0
        %v1205 = vsel %vm1181, 1, 0
        %v1206 = vsel %vm1182, 1, 0
        %v1207 = vcvt.s32.f32 %v1199
        %v1208 = vcvt.s32.f32 %v1200
        %v1209 = vcvt.s32.f32 %v1201
        %v1210 = vcvt.s32.f32 %v1202
        %v1211 = vcvt.s32.f32 %v1203
        %v1212 = vcvt.s32.f32 %v1204
        %v1213 = vcvt.s32.f32 %v1205
        %v1214 = vcvt.s32.f32 %v1206
        %v1215 = vpack.c.bf16 %v1209, %v1207
        %v1216 = vpack.c.bf16 %v1210, %v1208
        %v1217 = vpack.c.bf16 %v1213, %v1211
        %v1218 = vpack.c.bf16 %v1214, %v1212
        %v1219 = vld [vmem:[#allocation7] sm:$0xf]
        %v1220 = vld [vmem:[#allocation7 + $0x4] sm:$0xf]
        %v1221 = vld [vmem:[#allocation7 + $0x8] sm:$0xf]
        %v1222 = vld [vmem:[#allocation7 + $0xc] sm:$0xf]
        %v1223 = vld [vmem:[#allocation9] sm:$0xff]
        %v1224 = vld [vmem:[#allocation9 + $0x8] sm:$0xff]
        %v1225 = vld [vmem:[#allocation9 + $0x10] sm:$0xff]
        %v1226 = vld [vmem:[#allocation9 + $0x18] sm:$0xff]
        %1228 = vset.pattern.permute.xlu0 0
        %1229 = vperm.xlu0 %1228, %v1223
        %v1230 = vpop.permute.xlu0 %1229
        %1233 = vset.pattern.permute.xlu0 0
        %1234 = vperm.xlu0 %1233, %v1224
        %v1235 = vpop.permute.xlu0 %1234
        %1238 = vset.pattern.permute.xlu0 0
        %1239 = vperm.xlu0 %1238, %v1225
        %v1240 = vpop.permute.xlu0 %1239
        %1243 = vset.pattern.permute.xlu0 0
        %1244 = vperm.xlu0 %1243, %v1226
        %v1245 = vpop.permute.xlu0 %1244
        %v1251 = vunpack.c.l.b16 %v1219
        %v1252 = vunpack.c.l.b16 %v1220
        %v1253 = vunpack.c.l.b16 %v1221
        %v1254 = vunpack.c.l.b16 %v1222
        %v1255 = vpack.c.b16 %v1252, %v1251
        %v1256 = vpack.c.b16 %v1254, %v1253
        %v1258 = vsel %vm497, %v1255, 0
        %v1261 = vsel %vm497, %v1256, 0
        %1263 = vmatprep.subr.bf16.mxu0 %v1216
        %1264 = vmatpush1.bf16.msra.mxu0 %v1215
        %1265 = vmatprep.subr.bf16.mxu0 %v1218
        %1266 = vmatpush1.bf16.msra.mxu0 %v1217
        %1267 = vmatprep.subr.bf16.mxu0 0
        %1268 = vmatpush1.bf16.msra.mxu0 0
        %1269 = vmatprep.subr.bf16.mxu0 0
        %1270 = vmatpush1.bf16.msra.mxu0 0
        %1271 = vmatprep.subr.bf16.mxu0 0
        %1272 = vmatpush1.bf16.msra.mxu0 0
        %1273 = vmatprep.subr.bf16.mxu0 0
        %1274 = vmatpush1.bf16.msra.mxu0 0
        %1275 = vmatprep.subr.bf16.mxu0 0
        %1276 = vmatpush1.bf16.msra.mxu0 0
        %1277 = vmatprep.subr.bf16.mxu0 0
        %1278 = vmatpush1.bf16.msra.mxu0 0
        %1279 = vmatprep.subr.bf16.mxu0 0
        %1280 = vmatpush1.bf16.msra.mxu0 0
        %1281 = vmatprep.subr.bf16.mxu0 0
        %1282 = vmatpush1.bf16.msra.mxu0 0
        %1283 = vmatprep.subr.bf16.mxu0 0
        %1284 = vmatpush1.bf16.msra.mxu0 0
        %1285 = vmatprep.subr.bf16.mxu0 0
        %1286 = vmatpush1.bf16.msra.mxu0 0
        %1287 = vmatprep.subr.bf16.mxu0 0
        %1288 = vmatpush1.bf16.msra.mxu0 0
        %1289 = vmatprep.subr.bf16.mxu0 0
        %1290 = vmatpush1.bf16.msra.mxu0 0
        %1291 = vmatprep.subr.bf16.mxu0 0
        %1292 = vmatpush1.bf16.msra.mxu0 0
        %1293 = vmatprep.subr.bf16.mxu0 0
        %1294 = vmatpush1.bf16.msra.mxu0 0
        %1295 = vmatprep.mubr.bf16.mxu0 0
        %1296 = vmatmul.mubr.bf16.gmra.mrb[0].mxu0 %v1258
        %v1297 = vpop.f32.mrb[0].mxu0
        %v1298 = vadd.f32 %v1230, %v1297
        %v1299 = vpop.f32.mrb[0].mxu0
        %v1300 = vadd.f32 %v1230, %v1299
        %v1301 = vpop.f32.mrb[0].mxu0
        %v1302 = vadd.f32 %v1235, %v1301
        %v1303 = vpop.f32.mrb[0].mxu0
        %v1304 = vadd.f32 %v1235, %v1303
        %1305 = vmatprep.mubr.bf16.mxu0 0
        %1306 = vmatmul.mubr.bf16.gmra.mrb[0].mxu0 %v1261
        %v1307 = vpop.f32.mrb[0].mxu0
        %v1308 = vadd.f32 %v1240, %v1307
        %v1309 = vpop.f32.mrb[0].mxu0
        %v1310 = vadd.f32 %v1240, %v1309
        %v1311 = vpop.f32.mrb[0].mxu0
        %v1312 = vadd.f32 %v1245, %v1311
        %v1313 = vpop.f32.mrb[0].mxu0
        %v1314 = vadd.f32 %v1245, %v1313
        %1315 = vdwg.mxu0
        %v1316 = vadd.f32 %v1143, %v1298
        %v1317 = vadd.f32 %v1144, %v1300
        %v1318 = vadd.f32 %v1145, %v1302
        %v1319 = vadd.f32 %v1146, %v1304
        %v1320 = vadd.f32 %v1147, %v1308
        %v1321 = vadd.f32 %v1148, %v1310
        %v1322 = vadd.f32 %v1149, %v1312
        %v1323 = vadd.f32 %v1150, %v1314
        %s1324 = scalar_lea.vmem %s357, 128 [#allocation13]
        %1325 = vst [vmem:[%s1324] sm:$0xff] %v1316
        %1326 = vst [vmem:[%s1324 + $0x8] sm:$0xff] %v1317
        %1327 = vst [vmem:[%s1324 + $0x10] sm:$0xff] %v1318
        %1328 = vst [vmem:[%s1324 + $0x18] sm:$0xff] %v1319
        %1329 = vst [vmem:[%s1324 + $0x20] sm:$0xff] %v1320
        %1330 = vst [vmem:[%s1324 + $0x28] sm:$0xff] %v1321
        %1331 = vst [vmem:[%s1324 + $0x30] sm:$0xff] %v1322
        %1332 = vst [vmem:[%s1324 + $0x38] sm:$0xff] %v1323
        %v1333 = vld [vmem:[#allocation3] sm:$0xff]
        %v1334 = vld [vmem:[#allocation3 + $0x8] sm:$0xff]
        %v1335 = vld [vmem:[#allocation3 + $0x10] sm:$0xff]
        %v1336 = vld [vmem:[#allocation3 + $0x18] sm:$0xff]
        %v1337 = vld [vmem:[#allocation3 + $0x20] sm:$0xff]
        %v1338 = vld [vmem:[#allocation3 + $0x28] sm:$0xff]
        %v1339 = vld [vmem:[#allocation3 + $0x30] sm:$0xff]
        %v1340 = vld [vmem:[#allocation3 + $0x38] sm:$0xff]
        %v1341 = vadd.f32 %v1333, %v1316
        %v1342 = vadd.f32 %v1334, %v1317
        %v1343 = vadd.f32 %v1335, %v1318
        %v1344 = vadd.f32 %v1336, %v1319
        %v1345 = vadd.f32 %v1337, %v1320
        %v1346 = vadd.f32 %v1338, %v1321
        %v1347 = vadd.f32 %v1339, %v1322
        %v1348 = vadd.f32 %v1340, %v1323
        %v1349 = vmul.f32 %v1341, 0.5
        %v1350 = vmul.f32 %v1342, 0.5
        %v1351 = vmul.f32 %v1343, 0.5
        %v1352 = vmul.f32 %v1344, 0.5
        %v1353 = vmul.f32 %v1345, 0.5
        %v1354 = vmul.f32 %v1346, 0.5
        %v1355 = vmul.f32 %v1347, 0.5
        %v1356 = vmul.f32 %v1348, 0.5
        %vm1357 = vcmp.ge.f32.partialorder %v1349, 1.0
        %vm1358 = vcmp.ge.f32.partialorder %v1350, 1.0
        %vm1359 = vcmp.ge.f32.partialorder %v1351, 1.0
        %vm1360 = vcmp.ge.f32.partialorder %v1352, 1.0
        %vm1361 = vcmp.ge.f32.partialorder %v1353, 1.0
        %vm1362 = vcmp.ge.f32.partialorder %v1354, 1.0
        %vm1363 = vcmp.ge.f32.partialorder %v1355, 1.0
        %vm1364 = vcmp.ge.f32.partialorder %v1356, 1.0
        %v1365 = vsel %vm1357, 0.0, %v1349
        %v1366 = vsel %vm1358, 0.0, %v1350
        %v1367 = vsel %vm1359, 0.0, %v1351
        %v1368 = vsel %vm1360, 0.0, %v1352
        %v1369 = vsel %vm1361, 0.0, %v1353
        %v1370 = vsel %vm1362, 0.0, %v1354
        %v1371 = vsel %vm1363, 0.0, %v1355
        %v1372 = vsel %vm1364, 0.0, %v1356
        %1373 = vst [vmem:[#allocation3] sm:$0xff] %v1365
        %1374 = vst [vmem:[#allocation3 + $0x8] sm:$0xff] %v1366
        %1375 = vst [vmem:[#allocation3 + $0x10] sm:$0xff] %v1367
        %1376 = vst [vmem:[#allocation3 + $0x18] sm:$0xff] %v1368
        %1377 = vst [vmem:[#allocation3 + $0x20] sm:$0xff] %v1369
        %1378 = vst [vmem:[#allocation3 + $0x28] sm:$0xff] %v1370
        %1379 = vst [vmem:[#allocation3 + $0x30] sm:$0xff] %v1371
        %1380 = vst [vmem:[#allocation3 + $0x38] sm:$0xff] %v1372
        %v1381 = vsel %vm1357, 1, 0
        %v1382 = vsel %vm1358, 1, 0
        %v1383 = vsel %vm1359, 1, 0
        %v1384 = vsel %vm1360, 1, 0
        %v1385 = vsel %vm1361, 1, 0
        %v1386 = vsel %vm1362, 1, 0
        %v1387 = vsel %vm1363, 1, 0
        %v1388 = vsel %vm1364, 1, 0
        %v1389 = vcvt.s32.f32 %v1381
        %v1390 = vcvt.s32.f32 %v1382
        %v1391 = vcvt.s32.f32 %v1383
        %v1392 = vcvt.s32.f32 %v1384
        %v1393 = vcvt.s32.f32 %v1385
        %v1394 = vcvt.s32.f32 %v1386
        %v1395 = vcvt.s32.f32 %v1387
        %v1396 = vcvt.s32.f32 %v1388
        %v1397 = vpack.c.bf16 %v1391, %v1389
        %v1398 = vpack.c.bf16 %v1392, %v1390
        %v1399 = vpack.c.bf16 %v1395, %v1393
        %v1400 = vpack.c.bf16 %v1396, %v1394
        %v1401 = vld [vmem:[#allocation10] sm:$0xf]
        %v1402 = vld [vmem:[#allocation10 + $0x4] sm:$0xf]
        %v1403 = vld [vmem:[#allocation10 + $0x8] sm:$0xf]
        %v1404 = vld [vmem:[#allocation10 + $0xc] sm:$0xf]
        %v1405 = vld [vmem:[%s1324] sm:$0xff]
        %v1406 = vld [vmem:[%s1324 + $0x8] sm:$0xff]
        %v1407 = vld [vmem:[%s1324 + $0x10] sm:$0xff]
        %v1408 = vld [vmem:[%s1324 + $0x18] sm:$0xff]
        %v1409 = vld [vmem:[%s1324 + $0x20] sm:$0xff]
        %v1410 = vld [vmem:[%s1324 + $0x28] sm:$0xff]
        %v1411 = vld [vmem:[%s1324 + $0x30] sm:$0xff]
        %v1412 = vld [vmem:[%s1324 + $0x38] sm:$0xff]
        %v1413 = vld [vmem:[#allocation12] sm:$0xff]
        %v1414 = vld [vmem:[#allocation12 + $0x8] sm:$0xff]
        %v1415 = vld [vmem:[#allocation12 + $0x10] sm:$0xff]
        %v1416 = vld [vmem:[#allocation12 + $0x18] sm:$0xff]
        %1418 = vset.pattern.permute.xlu0 0
        %1419 = vperm.xlu0 %1418, %v1413
        %v1420 = vpop.permute.xlu0 %1419
        %1423 = vset.pattern.permute.xlu0 0
        %1424 = vperm.xlu0 %1423, %v1414
        %v1425 = vpop.permute.xlu0 %1424
        %1428 = vset.pattern.permute.xlu0 0
        %1429 = vperm.xlu0 %1428, %v1415
        %v1430 = vpop.permute.xlu0 %1429
        %1433 = vset.pattern.permute.xlu0 0
        %1434 = vperm.xlu0 %1433, %v1416
        %v1435 = vpop.permute.xlu0 %1434
        %v1441 = vunpack.c.l.b16 %v1401
        %v1442 = vunpack.c.l.b16 %v1402
        %v1443 = vunpack.c.l.b16 %v1403
        %v1444 = vunpack.c.l.b16 %v1404
        %v1445 = vpack.c.b16 %v1442, %v1441
        %v1446 = vpack.c.b16 %v1444, %v1443
        %v1448 = vsel %vm497, %v1445, 0
        %v1451 = vsel %vm497, %v1446, 0
        %1453 = vmatprep.subr.bf16.mxu0 %v1398
        %1454 = vmatpush1.bf16.msra.mxu0 %v1397
        %1455 = vmatprep.subr.bf16.mxu0 %v1400
        %1456 = vmatpush1.bf16.msra.mxu0 %v1399
        %1457 = vmatprep.subr.bf16.mxu0 0
        %1458 = vmatpush1.bf16.msra.mxu0 0
        %1459 = vmatprep.subr.bf16.mxu0 0
        %1460 = vmatpush1.bf16.msra.mxu0 0
        %1461 = vmatprep.subr.bf16.mxu0 0
        %1462 = vmatpush1.bf16.msra.mxu0 0
        %1463 = vmatprep.subr.bf16.mxu0 0
        %1464 = vmatpush1.bf16.msra.mxu0 0
        %1465 = vmatprep.subr.bf16.mxu0 0
        %1466 = vmatpush1.bf16.msra.mxu0 0
        %1467 = vmatprep.subr.bf16.mxu0 0
        %1468 = vmatpush1.bf16.msra.mxu0 0
        %1469 = vmatprep.subr.bf16.mxu0 0
        %1470 = vmatpush1.bf16.msra.mxu0 0
        %1471 = vmatprep.subr.bf16.mxu0 0
        %1472 = vmatpush1.bf16.msra.mxu0 0
        %1473 = vmatprep.subr.bf16.mxu0 0
        %1474 = vmatpush1.bf16.msra.mxu0 0
        %1475 = vmatprep.subr.bf16.mxu0 0
        %1476 = vmatpush1.bf16.msra.mxu0 0
        %1477 = vmatprep.subr.bf16.mxu0 0
        %1478 = vmatpush1.bf16.msra.mxu0 0
        %1479 = vmatprep.subr.bf16.mxu0 0
        %1480 = vmatpush1.bf16.msra.mxu0 0
        %1481 = vmatprep.subr.bf16.mxu0 0
        %1482 = vmatpush1.bf16.msra.mxu0 0
        %1483 = vmatprep.subr.bf16.mxu0 0
        %1484 = vmatpush1.bf16.msra.mxu0 0
        %1485 = vmatprep.mubr.bf16.mxu0 0
        %1486 = vmatmul.mubr.bf16.gmra.mrb[0].mxu0 %v1448
        %v1487 = vpop.f32.mrb[0].mxu0
        %v1488 = vadd.f32 %v1420, %v1487
        %v1489 = vpop.f32.mrb[0].mxu0
        %v1490 = vadd.f32 %v1420, %v1489
        %v1491 = vpop.f32.mrb[0].mxu0
        %v1492 = vadd.f32 %v1425, %v1491
        %v1493 = vpop.f32.mrb[0].mxu0
        %v1494 = vadd.f32 %v1425, %v1493
        %1495 = vmatprep.mubr.bf16.mxu0 0
        %1496 = vmatmul.mubr.bf16.gmra.mrb[0].mxu0 %v1451
        %v1497 = vpop.f32.mrb[0].mxu0
        %v1498 = vadd.f32 %v1430, %v1497
        %v1499 = vpop.f32.mrb[0].mxu0
        %v1500 = vadd.f32 %v1430, %v1499
        %v1501 = vpop.f32.mrb[0].mxu0
        %v1502 = vadd.f32 %v1435, %v1501
        %v1503 = vpop.f32.mrb[0].mxu0
        %v1504 = vadd.f32 %v1435, %v1503
        %1505 = vdwg.mxu0
        %v1506 = vadd.f32 %v1405, %v1488
        %v1507 = vadd.f32 %v1406, %v1490
        %v1508 = vadd.f32 %v1407, %v1492
        %v1509 = vadd.f32 %v1408, %v1494
        %v1510 = vadd.f32 %v1409, %v1498
        %v1511 = vadd.f32 %v1410, %v1500
        %v1512 = vadd.f32 %v1411, %v1502
        %v1513 = vadd.f32 %v1412, %v1504
        %1514 = vst [vmem:[%s1324] sm:$0xff] %v1506
        %1515 = vst [vmem:[%s1324 + $0x8] sm:$0xff] %v1507
        %1516 = vst [vmem:[%s1324 + $0x10] sm:$0xff] %v1508
        %1517 = vst [vmem:[%s1324 + $0x18] sm:$0xff] %v1509
        %1518 = vst [vmem:[%s1324 + $0x20] sm:$0xff] %v1510
        %1519 = vst [vmem:[%s1324 + $0x28] sm:$0xff] %v1511
        %1520 = vst [vmem:[%s1324 + $0x30] sm:$0xff] %v1512
        %1521 = vst [vmem:[%s1324 + $0x38] sm:$0xff] %v1513
        %s1522 = scalar_lea.vmem %s315, 192 [#allocation4]
        %v1523 = vld [vmem:[%s1522] sm:$0xff]
        %v1524 = vld [vmem:[%s1522 + $0x8] sm:$0xff]
        %v1525 = vld [vmem:[%s1522 + $0x10] sm:$0xff]
        %v1526 = vld [vmem:[%s1522 + $0x18] sm:$0xff]
        %v1527 = vld [vmem:[%s1522 + $0x20] sm:$0xff]
        %v1528 = vld [vmem:[%s1522 + $0x28] sm:$0xff]
        %v1529 = vld [vmem:[%s1522 + $0x30] sm:$0xff]
        %v1530 = vld [vmem:[%s1522 + $0x38] sm:$0xff]
        %v1531 = vld [vmem:[#allocation2] sm:$0xff]
        %v1532 = vld [vmem:[#allocation2 + $0x8] sm:$0xff]
        %v1533 = vld [vmem:[#allocation2 + $0x10] sm:$0xff]
        %v1534 = vld [vmem:[#allocation2 + $0x18] sm:$0xff]
        %v1535 = vld [vmem:[#allocation2 + $0x20] sm:$0xff]
        %v1536 = vld [vmem:[#allocation2 + $0x28] sm:$0xff]
        %v1537 = vld [vmem:[#allocation2 + $0x30] sm:$0xff]
        %v1538 = vld [vmem:[#allocation2 + $0x38] sm:$0xff]
        %v1539 = vadd.f32 %v1531, %v1523
        %v1540 = vadd.f32 %v1532, %v1524
        %v1541 = vadd.f32 %v1533, %v1525
        %v1542 = vadd.f32 %v1534, %v1526
        %v1543 = vadd.f32 %v1535, %v1527
        %v1544 = vadd.f32 %v1536, %v1528
        %v1545 = vadd.f32 %v1537, %v1529
        %v1546 = vadd.f32 %v1538, %v1530
        %v1547 = vmul.f32 %v1539, 0.5
        %v1548 = vmul.f32 %v1540, 0.5
        %v1549 = vmul.f32 %v1541, 0.5
        %v1550 = vmul.f32 %v1542, 0.5
        %v1551 = vmul.f32 %v1543, 0.5
        %v1552 = vmul.f32 %v1544, 0.5
        %v1553 = vmul.f32 %v1545, 0.5
        %v1554 = vmul.f32 %v1546, 0.5
        %vm1555 = vcmp.ge.f32.partialorder %v1547, 1.0
        %vm1556 = vcmp.ge.f32.partialorder %v1548, 1.0
        %vm1557 = vcmp.ge.f32.partialorder %v1549, 1.0
        %vm1558 = vcmp.ge.f32.partialorder %v1550, 1.0
        %vm1559 = vcmp.ge.f32.partialorder %v1551, 1.0
        %vm1560 = vcmp.ge.f32.partialorder %v1552, 1.0
        %vm1561 = vcmp.ge.f32.partialorder %v1553, 1.0
        %vm1562 = vcmp.ge.f32.partialorder %v1554, 1.0
        %v1563 = vsel %vm1555, 0.0, %v1547
        %v1564 = vsel %vm1556, 0.0, %v1548
        %v1565 = vsel %vm1557, 0.0, %v1549
        %v1566 = vsel %vm1558, 0.0, %v1550
        %v1567 = vsel %vm1559, 0.0, %v1551
        %v1568 = vsel %vm1560, 0.0, %v1552
        %v1569 = vsel %vm1561, 0.0, %v1553
        %v1570 = vsel %vm1562, 0.0, %v1554
        %1571 = vst [vmem:[#allocation2] sm:$0xff] %v1563
        %1572 = vst [vmem:[#allocation2 + $0x8] sm:$0xff] %v1564
        %1573 = vst [vmem:[#allocation2 + $0x10] sm:$0xff] %v1565
        %1574 = vst [vmem:[#allocation2 + $0x18] sm:$0xff] %v1566
        %1575 = vst [vmem:[#allocation2 + $0x20] sm:$0xff] %v1567
        %1576 = vst [vmem:[#allocation2 + $0x28] sm:$0xff] %v1568
        %1577 = vst [vmem:[#allocation2 + $0x30] sm:$0xff] %v1569
        %1578 = vst [vmem:[#allocation2 + $0x38] sm:$0xff] %v1570
        %v1579 = vsel %vm1555, 1, 0
        %v1580 = vsel %vm1556, 1, 0
        %v1581 = vsel %vm1557, 1, 0
        %v1582 = vsel %vm1558, 1, 0
        %v1583 = vsel %vm1559, 1, 0
        %v1584 = vsel %vm1560, 1, 0
        %v1585 = vsel %vm1561, 1, 0
        %v1586 = vsel %vm1562, 1, 0
        %v1587 = vcvt.s32.f32 %v1579
        %v1588 = vcvt.s32.f32 %v1580
        %v1589 = vcvt.s32.f32 %v1581
        %v1590 = vcvt.s32.f32 %v1582
        %v1591 = vcvt.s32.f32 %v1583
        %v1592 = vcvt.s32.f32 %v1584
        %v1593 = vcvt.s32.f32 %v1585
        %v1594 = vcvt.s32.f32 %v1586
        %v1595 = vpack.c.bf16 %v1589, %v1587
        %v1596 = vpack.c.bf16 %v1590, %v1588
        %v1597 = vpack.c.bf16 %v1593, %v1591
        %v1598 = vpack.c.bf16 %v1594, %v1592
        %v1599 = vld [vmem:[#allocation7] sm:$0xf]
        %v1600 = vld [vmem:[#allocation7 + $0x4] sm:$0xf]
        %v1601 = vld [vmem:[#allocation7 + $0x8] sm:$0xf]
        %v1602 = vld [vmem:[#allocation7 + $0xc] sm:$0xf]
        %v1603 = vld [vmem:[#allocation9] sm:$0xff]
        %v1604 = vld [vmem:[#allocation9 + $0x8] sm:$0xff]
        %v1605 = vld [vmem:[#allocation9 + $0x10] sm:$0xff]
        %v1606 = vld [vmem:[#allocation9 + $0x18] sm:$0xff]
        %1608 = vset.pattern.permute.xlu0 0
        %1609 = vperm.xlu0 %1608, %v1603
        %v1610 = vpop.permute.xlu0 %1609
        %1613 = vset.pattern.permute.xlu0 0
        %1614 = vperm.xlu0 %1613, %v1604
        %v1615 = vpop.permute.xlu0 %1614
        %1618 = vset.pattern.permute.xlu0 0
        %1619 = vperm.xlu0 %1618, %v1605
        %v1620 = vpop.permute.xlu0 %1619
        %1623 = vset.pattern.permute.xlu0 0
        %1624 = vperm.xlu0 %1623, %v1606
        %v1625 = vpop.permute.xlu0 %1624
        %v1631 = vunpack.c.l.b16 %v1599
        %v1632 = vunpack.c.l.b16 %v1600
        %v1633 = vunpack.c.l.b16 %v1601
        %v1634 = vunpack.c.l.b16 %v1602
        %v1635 = vpack.c.b16 %v1632, %v1631
        %v1636 = vpack.c.b16 %v1634, %v1633
        %v1638 = vsel %vm497, %v1635, 0
        %v1641 = vsel %vm497, %v1636, 0
        %1643 = vmatprep.subr.bf16.mxu0 %v1596
        %1644 = vmatpush1.bf16.msra.mxu0 %v1595
        %1645 = vmatprep.subr.bf16.mxu0 %v1598
        %1646 = vmatpush1.bf16.msra.mxu0 %v1597
        %1647 = vmatprep.subr.bf16.mxu0 0
        %1648 = vmatpush1.bf16.msra.mxu0 0
        %1649 = vmatprep.subr.bf16.mxu0 0
        %1650 = vmatpush1.bf16.msra.mxu0 0
        %1651 = vmatprep.subr.bf16.mxu0 0
        %1652 = vmatpush1.bf16.msra.mxu0 0
        %1653 = vmatprep.subr.bf16.mxu0 0
        %1654 = vmatpush1.bf16.msra.mxu0 0
        %1655 = vmatprep.subr.bf16.mxu0 0
        %1656 = vmatpush1.bf16.msra.mxu0 0
        %1657 = vmatprep.subr.bf16.mxu0 0
        %1658 = vmatpush1.bf16.msra.mxu0 0
        %1659 = vmatprep.subr.bf16.mxu0 0
        %1660 = vmatpush1.bf16.msra.mxu0 0
        %1661 = vmatprep.subr.bf16.mxu0 0
        %1662 = vmatpush1.bf16.msra.mxu0 0
        %1663 = vmatprep.subr.bf16.mxu0 0
        %1664 = vmatpush1.bf16.msra.mxu0 0
        %1665 = vmatprep.subr.bf16.mxu0 0
        %1666 = vmatpush1.bf16.msra.mxu0 0
        %1667 = vmatprep.subr.bf16.mxu0 0
        %1668 = vmatpush1.bf16.msra.mxu0 0
        %1669 = vmatprep.subr.bf16.mxu0 0
        %1670 = vmatpush1.bf16.msra.mxu0 0
        %1671 = vmatprep.subr.bf16.mxu0 0
        %1672 = vmatpush1.bf16.msra.mxu0 0
        %1673 = vmatprep.subr.bf16.mxu0 0
        %1674 = vmatpush1.bf16.msra.mxu0 0
        %1675 = vmatprep.mubr.bf16.mxu0 0
        %1676 = vmatmul.mubr.bf16.gmra.mrb[0].mxu0 %v1638
        %v1677 = vpop.f32.mrb[0].mxu0
        %v1678 = vadd.f32 %v1610, %v1677
        %v1679 = vpop.f32.mrb[0].mxu0
        %v1680 = vadd.f32 %v1610, %v1679
        %v1681 = vpop.f32.mrb[0].mxu0
        %v1682 = vadd.f32 %v1615, %v1681
        %v1683 = vpop.f32.mrb[0].mxu0
        %v1684 = vadd.f32 %v1615, %v1683
        %1685 = vmatprep.mubr.bf16.mxu0 0
        %1686 = vmatmul.mubr.bf16.gmra.mrb[0].mxu0 %v1641
        %v1687 = vpop.f32.mrb[0].mxu0
        %v1688 = vadd.f32 %v1620, %v1687
        %v1689 = vpop.f32.mrb[0].mxu0
        %v1690 = vadd.f32 %v1620, %v1689
        %v1691 = vpop.f32.mrb[0].mxu0
        %v1692 = vadd.f32 %v1625, %v1691
        %v1693 = vpop.f32.mrb[0].mxu0
        %v1694 = vadd.f32 %v1625, %v1693
        %1695 = vdwg.mxu0
        %v1696 = vadd.f32 %v1523, %v1678
        %v1697 = vadd.f32 %v1524, %v1680
        %v1698 = vadd.f32 %v1525, %v1682
        %v1699 = vadd.f32 %v1526, %v1684
        %v1700 = vadd.f32 %v1527, %v1688
        %v1701 = vadd.f32 %v1528, %v1690
        %v1702 = vadd.f32 %v1529, %v1692
        %v1703 = vadd.f32 %v1530, %v1694
        %s1704 = scalar_lea.vmem %s357, 192 [#allocation13]
        %1705 = vst [vmem:[%s1704] sm:$0xff] %v1696
        %1706 = vst [vmem:[%s1704 + $0x8] sm:$0xff] %v1697
        %1707 = vst [vmem:[%s1704 + $0x10] sm:$0xff] %v1698
        %1708 = vst [vmem:[%s1704 + $0x18] sm:$0xff] %v1699
        %1709 = vst [vmem:[%s1704 + $0x20] sm:$0xff] %v1700
        %1710 = vst [vmem:[%s1704 + $0x28] sm:$0xff] %v1701
        %1711 = vst [vmem:[%s1704 + $0x30] sm:$0xff] %v1702
        %1712 = vst [vmem:[%s1704 + $0x38] sm:$0xff] %v1703
        %v1713 = vld [vmem:[#allocation3] sm:$0xff]
        %v1714 = vld [vmem:[#allocation3 + $0x8] sm:$0xff]
        %v1715 = vld [vmem:[#allocation3 + $0x10] sm:$0xff]
        %v1716 = vld [vmem:[#allocation3 + $0x18] sm:$0xff]
        %v1717 = vld [vmem:[#allocation3 + $0x20] sm:$0xff]
        %v1718 = vld [vmem:[#allocation3 + $0x28] sm:$0xff]
        %v1719 = vld [vmem:[#allocation3 + $0x30] sm:$0xff]
        %v1720 = vld [vmem:[#allocation3 + $0x38] sm:$0xff]
        %v1721 = vadd.f32 %v1713, %v1696
        %v1722 = vadd.f32 %v1714, %v1697
        %v1723 = vadd.f32 %v1715, %v1698
        %v1724 = vadd.f32 %v1716, %v1699
        %v1725 = vadd.f32 %v1717, %v1700
        %v1726 = vadd.f32 %v1718, %v1701
        %v1727 = vadd.f32 %v1719, %v1702
        %v1728 = vadd.f32 %v1720, %v1703
        %v1729 = vmul.f32 %v1721, 0.5
        %v1730 = vmul.f32 %v1722, 0.5
        %v1731 = vmul.f32 %v1723, 0.5
        %v1732 = vmul.f32 %v1724, 0.5
        %v1733 = vmul.f32 %v1725, 0.5
        %v1734 = vmul.f32 %v1726, 0.5
        %v1735 = vmul.f32 %v1727, 0.5
        %v1736 = vmul.f32 %v1728, 0.5
        %vm1737 = vcmp.ge.f32.partialorder %v1729, 1.0
        %vm1738 = vcmp.ge.f32.partialorder %v1730, 1.0
        %vm1739 = vcmp.ge.f32.partialorder %v1731, 1.0
        %vm1740 = vcmp.ge.f32.partialorder %v1732, 1.0
        %vm1741 = vcmp.ge.f32.partialorder %v1733, 1.0
        %vm1742 = vcmp.ge.f32.partialorder %v1734, 1.0
        %vm1743 = vcmp.ge.f32.partialorder %v1735, 1.0
        %vm1744 = vcmp.ge.f32.partialorder %v1736, 1.0
        %v1745 = vsel %vm1737, 0.0, %v1729
        %v1746 = vsel %vm1738, 0.0, %v1730
        %v1747 = vsel %vm1739, 0.0, %v1731
        %v1748 = vsel %vm1740, 0.0, %v1732
        %v1749 = vsel %vm1741, 0.0, %v1733
        %v1750 = vsel %vm1742, 0.0, %v1734
        %v1751 = vsel %vm1743, 0.0, %v1735
        %v1752 = vsel %vm1744, 0.0, %v1736
        %1753 = vst [vmem:[#allocation3] sm:$0xff] %v1745
        %1754 = vst [vmem:[#allocation3 + $0x8] sm:$0xff] %v1746
        %1755 = vst [vmem:[#allocation3 + $0x10] sm:$0xff] %v1747
        %1756 = vst [vmem:[#allocation3 + $0x18] sm:$0xff] %v1748
        %1757 = vst [vmem:[#allocation3 + $0x20] sm:$0xff] %v1749
        %1758 = vst [vmem:[#allocation3 + $0x28] sm:$0xff] %v1750
        %1759 = vst [vmem:[#allocation3 + $0x30] sm:$0xff] %v1751
        %1760 = vst [vmem:[#allocation3 + $0x38] sm:$0xff] %v1752
        %v1761 = vsel %vm1737, 1, 0
        %v1762 = vsel %vm1738, 1, 0
        %v1763 = vsel %vm1739, 1, 0
        %v1764 = vsel %vm1740, 1, 0
        %v1765 = vsel %vm1741, 1, 0
        %v1766 = vsel %vm1742, 1, 0
        %v1767 = vsel %vm1743, 1, 0
        %v1768 = vsel %vm1744, 1, 0
        %v1769 = vcvt.s32.f32 %v1761
        %v1770 = vcvt.s32.f32 %v1762
        %v1771 = vcvt.s32.f32 %v1763
        %v1772 = vcvt.s32.f32 %v1764
        %v1773 = vcvt.s32.f32 %v1765
        %v1774 = vcvt.s32.f32 %v1766
        %v1775 = vcvt.s32.f32 %v1767
        %v1776 = vcvt.s32.f32 %v1768
        %v1777 = vpack.c.bf16 %v1771, %v1769
        %v1778 = vpack.c.bf16 %v1772, %v1770
        %v1779 = vpack.c.bf16 %v1775, %v1773
        %v1780 = vpack.c.bf16 %v1776, %v1774
        %v1781 = vld [vmem:[#allocation10] sm:$0xf]
        %v1782 = vld [vmem:[#allocation10 + $0x4] sm:$0xf]
        %v1783 = vld [vmem:[#allocation10 + $0x8] sm:$0xf]
        %v1784 = vld [vmem:[#allocation10 + $0xc] sm:$0xf]
        %v1785 = vld [vmem:[%s1704] sm:$0xff]
        %v1786 = vld [vmem:[%s1704 + $0x8] sm:$0xff]
        %v1787 = vld [vmem:[%s1704 + $0x10] sm:$0xff]
        %v1788 = vld [vmem:[%s1704 + $0x18] sm:$0xff]
        %v1789 = vld [vmem:[%s1704 + $0x20] sm:$0xff]
        %v1790 = vld [vmem:[%s1704 + $0x28] sm:$0xff]
        %v1791 = vld [vmem:[%s1704 + $0x30] sm:$0xff]
        %v1792 = vld [vmem:[%s1704 + $0x38] sm:$0xff]
        %v1793 = vld [vmem:[#allocation12] sm:$0xff]
        %v1794 = vld [vmem:[#allocation12 + $0x8] sm:$0xff]
        %v1795 = vld [vmem:[#allocation12 + $0x10] sm:$0xff]
        %v1796 = vld [vmem:[#allocation12 + $0x18] sm:$0xff]
        %1798 = vset.pattern.permute.xlu0 0
        %1799 = vperm.xlu0 %1798, %v1793
        %v1800 = vpop.permute.xlu0 %1799
        %1803 = vset.pattern.permute.xlu0 0
        %1804 = vperm.xlu0 %1803, %v1794
        %v1805 = vpop.permute.xlu0 %1804
        %1808 = vset.pattern.permute.xlu0 0
        %1809 = vperm.xlu0 %1808, %v1795
        %v1810 = vpop.permute.xlu0 %1809
        %1813 = vset.pattern.permute.xlu0 0
        %1814 = vperm.xlu0 %1813, %v1796
        %v1815 = vpop.permute.xlu0 %1814
        %v1821 = vunpack.c.l.b16 %v1781
        %v1822 = vunpack.c.l.b16 %v1782
        %v1823 = vunpack.c.l.b16 %v1783
        %v1824 = vunpack.c.l.b16 %v1784
        %v1825 = vpack.c.b16 %v1822, %v1821
        %v1826 = vpack.c.b16 %v1824, %v1823
        %v1828 = vsel %vm497, %v1825, 0
        %v1831 = vsel %vm497, %v1826, 0
        %1833 = vmatprep.subr.bf16.mxu0 %v1778
        %1834 = vmatpush1.bf16.msra.mxu0 %v1777
        %1835 = vmatprep.subr.bf16.mxu0 %v1780
        %1836 = vmatpush1.bf16.msra.mxu0 %v1779
        %1837 = vmatprep.subr.bf16.mxu0 0
        %1838 = vmatpush1.bf16.msra.mxu0 0
        %1839 = vmatprep.subr.bf16.mxu0 0
        %1840 = vmatpush1.bf16.msra.mxu0 0
        %1841 = vmatprep.subr.bf16.mxu0 0
        %1842 = vmatpush1.bf16.msra.mxu0 0
        %1843 = vmatprep.subr.bf16.mxu0 0
        %1844 = vmatpush1.bf16.msra.mxu0 0
        %1845 = vmatprep.subr.bf16.mxu0 0
        %1846 = vmatpush1.bf16.msra.mxu0 0
        %1847 = vmatprep.subr.bf16.mxu0 0
        %1848 = vmatpush1.bf16.msra.mxu0 0
        %1849 = vmatprep.subr.bf16.mxu0 0
        %1850 = vmatpush1.bf16.msra.mxu0 0
        %1851 = vmatprep.subr.bf16.mxu0 0
        %1852 = vmatpush1.bf16.msra.mxu0 0
        %1853 = vmatprep.subr.bf16.mxu0 0
        %1854 = vmatpush1.bf16.msra.mxu0 0
        %1855 = vmatprep.subr.bf16.mxu0 0
        %1856 = vmatpush1.bf16.msra.mxu0 0
        %1857 = vmatprep.subr.bf16.mxu0 0
        %1858 = vmatpush1.bf16.msra.mxu0 0
        %1859 = vmatprep.subr.bf16.mxu0 0
        %1860 = vmatpush1.bf16.msra.mxu0 0
        %1861 = vmatprep.subr.bf16.mxu0 0
        %1862 = vmatpush1.bf16.msra.mxu0 0
        %1863 = vmatprep.subr.bf16.mxu0 0
        %1864 = vmatpush1.bf16.msra.mxu0 0
        %1865 = vmatprep.mubr.bf16.mxu0 0
        %1866 = vmatmul.mubr.bf16.gmra.mrb[0].mxu0 %v1828
        %v1867 = vpop.f32.mrb[0].mxu0
        %v1868 = vadd.f32 %v1800, %v1867
        %v1869 = vpop.f32.mrb[0].mxu0
        %v1870 = vadd.f32 %v1800, %v1869
        %v1871 = vpop.f32.mrb[0].mxu0
        %v1872 = vadd.f32 %v1805, %v1871
        %v1873 = vpop.f32.mrb[0].mxu0
        %v1874 = vadd.f32 %v1805, %v1873
        %1875 = vmatprep.mubr.bf16.mxu0 0
        %1876 = vmatmul.mubr.bf16.gmra.mrb[0].mxu0 %v1831
        %v1877 = vpop.f32.mrb[0].mxu0
        %v1878 = vadd.f32 %v1810, %v1877
        %v1879 = vpop.f32.mrb[0].mxu0
        %v1880 = vadd.f32 %v1810, %v1879
        %v1881 = vpop.f32.mrb[0].mxu0
        %v1882 = vadd.f32 %v1815, %v1881
        %v1883 = vpop.f32.mrb[0].mxu0
        %v1884 = vadd.f32 %v1815, %v1883
        %1885 = vdwg.mxu0
        %v1886 = vadd.f32 %v1785, %v1868
        %v1887 = vadd.f32 %v1786, %v1870
        %v1888 = vadd.f32 %v1787, %v1872
        %v1889 = vadd.f32 %v1788, %v1874
        %v1890 = vadd.f32 %v1789, %v1878
        %v1891 = vadd.f32 %v1790, %v1880
        %v1892 = vadd.f32 %v1791, %v1882
        %v1893 = vadd.f32 %v1792, %v1884
        %1894 = vst [vmem:[%s1704] sm:$0xff] %v1886
        %1895 = vst [vmem:[%s1704 + $0x8] sm:$0xff] %v1887
        %1896 = vst [vmem:[%s1704 + $0x10] sm:$0xff] %v1888
        %1897 = vst [vmem:[%s1704 + $0x18] sm:$0xff] %v1889
        %1898 = vst [vmem:[%s1704 + $0x20] sm:$0xff] %v1890
        %1899 = vst [vmem:[%s1704 + $0x28] sm:$0xff] %v1891
        %1900 = vst [vmem:[%s1704 + $0x30] sm:$0xff] %v1892
        %1901 = vst [vmem:[%s1704 + $0x38] sm:$0xff] %v1893
        %s1902 = sand.u32 %s169, 1
        %s1903 = scalar_lea.sflag [#allocation6], %s1902
        %s1904 = sand.u32 %s169, 1
        %s1905 = smul.addr %s1904, 256
        %s1906 = scalar_lea.vmem [#allocation13], %s1905
        // Predicated region
        $region65: #{ms_mlp_conv_pallas.1} parent=39 // pred_check
          %p1907 = pneg %p179
        $region66: #{ms_mlp_conv_pallas.1} parent=39 // pred_check_branch
          %1909 = sbr.rel (%p1907) target = $region68
        $region67: #{ms_mlp_conv_pallas.1} parent=39 // pred_region
          #allocation17 [shape = 'u32[6]{0}', space=smem, size = 0x18, scoped, tag = 'DMA stride descriptor']
          %s1910 = smul.u32 4, %s31
          %s1911 = smul.u32 2, %s30
          %s1913 = ssub.s32 4096, 4096
          %1914 = vsyncadd %s1903, %s1913
          %s1915 = smul.addr %s29, 8
          %s1916 = sadd.s32 %s1911, %s1915
          %s1917 = smul.addr %s1910, 16
          %s1918 = sadd.s32 %s1916, %s1917
          %s1919 = smul.addr %s1918, 128
          %s1920 = scalar_lea.hbm %s5, %s1919
          %s1922 = sshll.u32 1, 14
          %s1923 = sxor.u32 4294967295, %s1922
          %s1926 = sshll.u32 7, 18
          %s1927 = sxor.u32 4294967295, %s1926
          %s1928 = sand.u32 0, %s1927
          %s1930 = sor.u32 %s1928, 0
          %s1932 = sshll.u32 3, 24
          %s1933 = sxor.u32 4294967295, %s1932
          %s1934 = sand.u32 %s1930, %s1933
          %s1936 = sor.u32 %s1934, 0
          %s1937 = sshll.u32 %s1906, 4
          %s1938 = int_to_ptr.vmem [resolvable:$true] %s1937
          %1944 = sst [smem:[#allocation17]] 1024
          %s1945 = scalar_lea.smem [#allocation17], 1
          %1946 = sst [smem:[%s1945]] 2048
          %s1947 = scalar_lea.smem [#allocation17], 2
          %1948 = sst [smem:[%s1947]] 4
          %s1949 = scalar_lea.smem [#allocation17], 3
          %1950 = sst [smem:[%s1949]] 256
          %s1951 = scalar_lea.smem [#allocation17], 4
          %1952 = sst [smem:[%s1951]] 256
          %s1953 = scalar_lea.smem [#allocation17], 5
          %1954 = sst [smem:[%s1953]] 16
          %1956 = dma.general %s1938, 4096, %s1920, %s1903, [#allocation16], [#allocation17], %s1936, 0
        $region68: #{ms_mlp_conv_pallas.1} parent=39 // pred_fallthru
          _
      $region40: #{ms_mlp_conv_pallas.1} parent=5 // pred_fallthru
        _
      %p1957 = scmp.le.s32.totalorder 2, %s19
      // Predicated region
      $region69: #{ms_mlp_conv_pallas.1} parent=5 // pred_check
        %p1958 = pneg %p1957
      $region70: #{ms_mlp_conv_pallas.1} parent=5 // pred_check_branch
        %1960 = sbr.rel (%p1958) target = $region72
      $region71: #{ms_mlp_conv_pallas.1} parent=5 // pred_region
        %s1961 = ssub.s32 %s19, 2
        // Predicated region
        $region73: #{ms_mlp_conv_pallas.1} parent=71 // pred_check
          %p1962 = pneg %p185
        $region74: #{ms_mlp_conv_pallas.1} parent=71 // pred_check_branch
          %1964 = sbr.rel (%p1962) target = $region76
        $region75: #{ms_mlp_conv_pallas.1} parent=71 // pred_region
          %s1965 = sand.u32 %s170, 1
          %s1966 = scalar_lea.sflag [#allocation6], %s1965
          %s1967 = sand.u32 %s170, 1
          %s1968 = smul.addr %s1967, 256
          %s1969 = scalar_lea.vmem [#allocation13], %s1968
          %1970 = dma.done %s1966, 4096
        $region76: #{ms_mlp_conv_pallas.1} parent=71 // pred_fallthru
          _
      $region72: #{ms_mlp_conv_pallas.1} parent=5 // pred_fallthru
        _
    $region6: #{ms_mlp_conv_pallas.1} parent=1 // loop_footer
      %s23 = sadd.s32 1, %s19
    $region7: #{ms_mlp_conv_pallas.1} parent=1 // loop_footer_branch
      %18 = sbr.rel target = $region3
    $region8: #{ms_mlp_conv_pallas.1} parent=1 // loop_exit
      _
    %1971 = vsyncpa [#allocation5], 1
    %s1972 = scalar_lea.sflag [#allocation5], 1
    %1973 = vsyncpa %s1972, 1
    %1974 = vsyncpa [#allocation8], 1
    %1975 = vsyncpa [#allocation11], 1
    %1976 = vsyncpa [#allocation6], 1
    %s1977 = scalar_lea.sflag [#allocation6], 1
    %1978 = vsyncpa %s1977, 1

</llo_original>
